<compile_context>
chip_gen: v7x
topology: tpu7x:2x2x1
jax: 0.10.0
libtpu: 0.0.40
codegen_flags: <defaults>
</compile_context>

<pallas_src>
import functools
import numpy as np
import jax
import jax.numpy as jnp
from jax.experimental import pallas as pl
from jax.experimental.pallas import tpu as pltpu


# --------------------------------------------------------------- fused kernel

def fused_kernel(x_ref, we_ref, be_ref, wih_ref, bih_ref, whh_ref, bhh_ref,
                 w1f_ref, b1f_ref, w2f_ref, b2f_ref,
                 out_ref, gi_scr, h_scr, h_carry, *, Tc, BE, H):
    """One (episode-block, time-chunk) tile.

    x_ref   : (1, Tc*BE, Din)  time-major rows (row t*BE+j = local episode j, step t)
    out_ref : (1, Tc*BE, OUT)  lane-dense slab: [:, :A]=scaled mean, [:, A]=value
    gi_scr  : (Tc*BE, 3H) VMEM hoisted input-gate projections (f32)
    h_scr   : (Tc*BE, H)  VMEM hidden states for every step of this chunk (f32)
    h_carry : (BE, H)     persistent VMEM hidden state carried across time chunks
    """
    tc = pl.program_id(1)

    @pl.when(tc == 0)
    def _init():
        h_carry[...] = jnp.zeros_like(h_carry)

    x = x_ref[0]                                                    # (rows, Din)

    # ---- obs encoder: Linear + ReLU, bf16 MXU operands, f32 accumulation ----
    enc = jnp.maximum(
        jnp.dot(x.astype(jnp.bfloat16), we_ref[...],
                preferred_element_type=jnp.float32) + be_ref[...], 0.0)

    # ---- input-gate projection hoisted out of the recurrence ----
    gi_scr[...] = (jnp.dot(enc.astype(jnp.bfloat16), wih_ref[...],
                           preferred_element_type=jnp.float32) + bih_ref[...])

    # hoisted broadcast (JAX does not CSE broadcast_in_dim inside the loop)
    bhh = jnp.broadcast_to(bhh_ref[...], (BE, 3 * H))
    whh = whh_ref[...]                                              # (H, 3H) bf16

    def gru_step(row, h):
        gi = gi_scr[pl.ds(row, BE), :]                              # (BE, 3H)
        gh = jnp.dot(h.astype(jnp.bfloat16), whh,
                     preferred_element_type=jnp.float32) + bhh
        # sigmoid(x) = 0.5*(tanh(x/2)+1): one EUP op per gate (vs exp+recip);
        # gate math stays f32 (v5e has no bf16 VPU/EUP).
        r = 0.5 * (jnp.tanh(0.5 * (gi[:, :H] + gh[:, :H])) + 1.0)
        z = 0.5 * (jnp.tanh(0.5 * (gi[:, H:2 * H] + gh[:, H:2 * H])) + 1.0)
        n = jnp.tanh(gi[:, 2 * H:] + r * gh[:, 2 * H:])
        h_new = (1.0 - z) * n + z * h
        h_scr[pl.ds(row, BE), :] = h_new
        return h_new

    h = h_carry[...]
    if Tc <= 32:
        for t in range(Tc):                                         # static unroll
            h = gru_step(t * BE, h)
    else:
        # bounded unroll keeps LLO visibility without blowing the 64-vreg budget
        h = jax.lax.fori_loop(
            0, Tc, lambda t, hh: gru_step(pl.multiple_of(t * BE, 8), hh),
            h, unroll=8)
    h_carry[...] = h

    # ---- fused policy-mean / value heads, one lane-dense output store ----
    hs = h_scr[...]                                                 # (rows, H)
    h1 = jnp.maximum(
        jnp.dot(hs.astype(jnp.bfloat16), w1f_ref[...],
                preferred_element_type=jnp.float32) + b1f_ref[...], 0.0)
    out_ref[0] = (jnp.dot(h1.astype(jnp.bfloat16), w2f_ref[...],
                          preferred_element_type=jnp.float32)
                  + b2f_ref[...]).astype(out_ref.dtype)


# ------------------------------------------------------------------ wrappers

def _device_info():
    """(has a second TensorCore, MXU M dimension) -- trace-time query."""
    try:
        kind = jax.devices()[0].device_kind.lower()
    except Exception:
        kind = ""
    multi_tc = ("v7" in kind) or ("7x" in kind)       # v7x: 2 TCs per chip
    mxu_m = 128 if "v5" in kind else 256              # v5e MXU is 128-tall
    return multi_tc, mxu_m


def _choose_time_chunk(T, BE, Din, OUT, H, x_bytes, out_bytes,
                       budget=40 * 1024 * 1024):
    """Largest divisor of T whose per-chunk scratch + double-buffered x/out
    blocks fit the VMEM budget (keeps v7x's 64 MiB per TC safe)."""
    per_step = BE * (4 * H * 4 + 2 * (Din * x_bytes + OUT * out_bytes))
    best = 1
    for tc in range(1, T + 1):
        if T % tc == 0 and tc * per_step <= budget:
            best = tc
    return best


def _estimate_vmem_bytes(Tc, BE, Din, OUT, H, hid, x_bytes, out_bytes):
    rows = Tc * BE
    scratch = rows * 4 * H * 4 + BE * H * 4            # gi_scr + h_scr + h_carry
    io = 2 * rows * (Din * x_bytes + OUT * out_bytes)  # double-buffered blocks
    w = Din * hid + hid * 3 * H + H * 3 * H + H * 2 * hid + 2 * hid * OUT
    b = hid + 3 * H + 3 * H + 2 * hid + OUT
    return scratch + io + 2 * (w * 2 + b * 4)          # bf16 weights, f32 biases


def gru_actor_critic_forward(params, observations, budgets, *,
                             hid_size, rnn_hid, action_dim,
                             mean_scaler=0.1, std_scaler=1.0):
    n_epi, T = observations.shape[:2]
    x = jnp.concatenate(
        [observations.reshape(n_epi, T, -1), budgets.reshape(n_epi, T, 1)], -1
    ).astype(jnp.float32)
    Din = x.shape[-1]
    A = action_dim
    H = rnn_hid
    OUT = ((A + 1 + 127) // 128) * 128                 # lane-dense padded head out

    # Split episodes into 2 blocks only when a second TensorCore exists (v7x)
    # AND each half still fills the MXU M dimension; never on 1-TC v5e/v6e.
    multi_tc, mxu_m = _device_info()
    n_blocks = 2 if (multi_tc and n_epi % 2 == 0 and n_epi // 2 >= mxu_m) else 1

    # Pad episodes-per-block to a sublane multiple (8) so every per-step
    # gi_scr/h_scr slice is whole (8,128) tiles; padded rows are dropped below.
    per_block = (n_epi + n_blocks - 1) // n_blocks
    BE = ((per_block + 7) // 8) * 8
    n_epi_pad = n_blocks * BE
    if n_epi_pad > n_epi:
        x = jnp.concatenate(
            [x, jnp.zeros((n_epi_pad - n_epi, T, Din), jnp.float32)], axis=0)

    # Output slab dtype: bf16 once the 128-lane writeback is HBM-relevant.
    N_total = n_blocks * T * BE
    out_dtype = jnp.bfloat16 if N_total >= 4096 else jnp.float32
    x_bytes, out_bytes = 4, jnp.dtype(out_dtype).itemsize

    Tc = _choose_time_chunk(T, BE, Din, OUT, H, x_bytes, out_bytes)
    n_tc = T // Tc
    rows = Tc * BE

    # Pack each episode block time-major: row t*BE+j = (local episode j, step t).
    # TODO(synk): produce observations time-major upstream to drop this transpose pass.
    xb = (x.reshape(n_blocks, BE, T, Din)
           .transpose(0, 2, 1, 3)
           .reshape(n_blocks, T * BE, Din))

    # Fuse head weights; mean_scaler folded into the policy columns so the
    # kernel output needs no post-scaling. out[:, :A]=scaled mean, out[:, A]=value.
    w1f = jnp.concatenate([params["pm1_w"], params["v1_w"]], axis=1)
    b1f = jnp.concatenate([params["pm1_b"], params["v1_b"]], axis=1)
    w2f = jnp.zeros((2 * hid_size, OUT), jnp.float32)
    w2f = w2f.at[:hid_size, :A].set(params["pm2_w"] * mean_scaler)
    w2f = w2f.at[hid_size:, A:A + 1].set(params["v2_w"])
    b2f = jnp.zeros((1, OUT), jnp.float32)
    b2f = b2f.at[:, :A].set(params["pm2_b"] * mean_scaler)
    b2f = b2f.at[:, A:A + 1].set(params["v2_b"])

    # bf16 MXU weights (cast once); biases stay f32.
    bf16 = jnp.bfloat16
    we = params["enc_w"].astype(bf16)
    wih = params["w_ih"].astype(bf16)
    whh = params["w_hh"].astype(bf16)
    w1f = w1f.astype(bf16)
    w2f = w2f.astype(bf16)

    kernel = functools.partial(fused_kernel, Tc=Tc, BE=BE, H=H)

    def full(shape):
        return pl.BlockSpec(shape, lambda e, t: (0,) * len(shape))

    vmem_limit = min(
        64 * 1024 * 1024,
        max(32 * 1024 * 1024,
            int(1.5 * _estimate_vmem_bytes(Tc, BE, Din, OUT, H, hid_size,
                                           x_bytes, out_bytes))))

    out = pl.pallas_call(
        kernel,
        out_shape=jax.ShapeDtypeStruct((n_blocks, T * BE, OUT), out_dtype),
        grid=(n_blocks, n_tc),
        in_specs=[
            pl.BlockSpec((1, rows, Din), lambda e, t: (e, t, 0)),
            full((Din, hid_size)), full((1, hid_size)),
            full((hid_size, 3 * H)), full((1, 3 * H)),
            full((H, 3 * H)), full((1, 3 * H)),
            full((H, 2 * hid_size)), full((1, 2 * hid_size)),
            full((2 * hid_size, OUT)), full((1, OUT)),
        ],
        out_specs=pl.BlockSpec((1, rows, OUT), lambda e, t: (e, t, 0)),
        scratch_shapes=[pltpu.VMEM((rows, 3 * H), jnp.float32),
                        pltpu.VMEM((rows, H), jnp.float32),
                        pltpu.VMEM((BE, H), jnp.float32)],
        compiler_params=pltpu.CompilerParams(
            dimension_semantics=("parallel", "arbitrary"),
            vmem_limit_bytes=vmem_limit),
    )(xb, we, params["enc_b"], wih, params["b_ih"], whh, params["b_hh"],
      w1f, b1f, w2f, b2f)

    # Unpack lane-dense slab back to batch-major order, drop padded episodes.
    out = (out.reshape(n_blocks, T, BE, OUT)
              .transpose(0, 2, 1, 3)
              .reshape(n_blocks * BE, T, OUT)[:n_epi]
              .astype(jnp.float32))
    mean = out[..., :A]                    # mean_scaler already folded in
    value = out[..., A]
    std = std_scaler * jnp.exp(params["log_std"])
    # Normal(mean, std) returned as its parameters (no array form of the
    # torch.distributions object).
    return mean, std, value


# ---------------------------------------------------------------- parameters

def init_params(key, in_dim, hid_size, rnn_hid, action_dim):
    def lin(k, fan_in, fan_out):
        kw, kb = jax.random.split(k)
        bound = 1.0 / np.sqrt(fan_in)
        w = jax.random.uniform(kw, (fan_in, fan_out), jnp.float32, -bound, bound)
        b = jax.random.uniform(kb, (1, fan_out), jnp.float32, -bound, bound)
        return w, b

    ks = jax.random.split(key, 8)
    p = {}
    p["enc_w"], p["enc_b"] = lin(ks[0], in_dim, hid_size)
    # GRU weights, PyTorch gate order (r, z, n); stored transposed for x @ W^T.
    bound = 1.0 / np.sqrt(rnn_hid)
    p["w_ih"] = jax.random.uniform(ks[1], (hid_size, 3 * rnn_hid), jnp.float32, -bound, bound)
    p["w_hh"] = jax.random.uniform(ks[2], (rnn_hid, 3 * rnn_hid), jnp.float32, -bound, bound)
    p["b_ih"] = jax.random.uniform(ks[3], (1, 3 * rnn_hid), jnp.float32, -bound, bound)
    p["b_hh"] = jax.random.uniform(ks[4], (1, 3 * rnn_hid), jnp.float32, -bound, bound)
    p["pm1_w"], p["pm1_b"] = lin(ks[5], rnn_hid, hid_size)
    p["pm2_w"], p["pm2_b"] = lin(ks[6], hid_size, action_dim)
    kv1, kv2 = jax.random.split(ks[7])
    p["v1_w"], p["v1_b"] = lin(kv1, rnn_hid, hid_size)
    p["v2_w"], p["v2_b"] = lin(kv2, hid_size, 1)
    p["log_std"] = jnp.full((action_dim,), np.log(0.1), jnp.float32)
    return p


# --------------------------------------------------------- pure-JAX reference

def reference_forward(params, observations, budgets, *, rnn_hid):
    n_epi, epi_len = observations.shape[:2]
    x = jnp.concatenate(
        [observations.reshape(n_epi, epi_len, -1), budgets.reshape(n_epi, epi_len, 1)], -1)
    enc = jnp.maximum(x @ params["enc_w"] + params["enc_b"][0], 0.0)

    def step(h, x_t):
        gi = x_t @ params["w_ih"] + params["b_ih"][0]
        gh = h @ params["w_hh"] + params["b_hh"][0]
        H = rnn_hid
        r = jax.nn.sigmoid(gi[:, :H] + gh[:, :H])
        z = jax.nn.sigmoid(gi[:, H:2 * H] + gh[:, H:2 * H])
        n = jnp.tanh(gi[:, 2 * H:] + r * gh[:, 2 * H:])
        h_new = (1.0 - z) * n + z * h
        return h_new, h_new

    h0 = jnp.zeros((n_epi, rnn_hid), jnp.float32)
    _, hs = jax.lax.scan(step, h0, enc.transpose(1, 0, 2))
    h = hs.transpose(1, 0, 2)
    mean = (jnp.maximum(h @ params["pm1_w"] + params["pm1_b"][0], 0.0)
            @ params["pm2_w"] + params["pm2_b"][0]) * 0.1
    value = (jnp.maximum(h @ params["v1_w"] + params["v1_b"][0], 0.0)
             @ params["v2_w"] + params["v2_b"][0]).reshape(n_epi, epi_len)
    std = jnp.exp(params["log_std"])
    return mean, std, value


# --------------------------------------------------------------------- main --

if __name__ == "__main__":
    n_epi, epi_len = 2, 8
    obs_matrix_dim = (4, 4)
    hid_size = 64
    rnn_hid_size = 128
    action_dim = 4
    in_dim = obs_matrix_dim[0] * obs_matrix_dim[1] + 1

    key = jax.random.PRNGKey(0)
    k_obs, k_bud, k_par = jax.random.split(key, 3)
    observations = jax.random.normal(
        k_obs, (n_epi, epi_len, obs_matrix_dim[0], obs_matrix_dim[1]), jnp.float32)
    budgets = jax.random.uniform(k_bud, (n_epi, epi_len), jnp.float32)
    params = init_params(k_par, in_dim, hid_size, rnn_hid_size, action_dim)

    fwd = jax.jit(functools.partial(
        gru_actor_critic_forward,
        hid_size=hid_size, rnn_hid=rnn_hid_size, action_dim=action_dim))
    mean, std, value = fwd(params, observations, budgets)
    jax.block_until_ready((mean, std, value))

    mean_r, std_r, value_r = reference_forward(
        params, observations, budgets, rnn_hid=rnn_hid_size)
    assert mean.shape == (n_epi, epi_len, action_dim)
    assert value.shape == (n_epi, epi_len)
    # Kernel matmuls use bf16 MXU operands (f32 accumulate) vs the f32 reference,
    # so tolerances reflect bf16 operand rounding through the 8-step recurrence.
    assert np.allclose(np.asarray(mean), np.asarray(mean_r), atol=3e-2, rtol=3e-2)
    assert np.allclose(np.asarray(value), np.asarray(value_r), atol=3e-2, rtol=3e-2)
    assert np.allclose(np.asarray(std), np.asarray(std_r), atol=1e-6)

    print("KERNEL_OK")
</pallas_src>

<mosaic_0001>
module attributes {stable_mosaic.version = 11 : i64} {
  func.func @fused_kernel(%arg0: i32, %arg1: i32, %arg2: memref<1x64x17xf32, #tpu.memory_space<vmem>>, %arg3: memref<17x64xbf16, #tpu.memory_space<vmem>>, %arg4: memref<1x64xf32, #tpu.memory_space<vmem>>, %arg5: memref<64x384xbf16, #tpu.memory_space<vmem>>, %arg6: memref<1x384xf32, #tpu.memory_space<vmem>>, %arg7: memref<128x384xbf16, #tpu.memory_space<vmem>>, %arg8: memref<1x384xf32, #tpu.memory_space<vmem>>, %arg9: memref<128x128xbf16, #tpu.memory_space<vmem>>, %arg10: memref<1x128xf32, #tpu.memory_space<vmem>>, %arg11: memref<128x128xbf16, #tpu.memory_space<vmem>>, %arg12: memref<1x128xf32, #tpu.memory_space<vmem>>, %arg13: memref<1x64x128xf32, #tpu.memory_space<vmem>>, %arg14: memref<64x384xf32, #tpu.memory_space<vmem>>, %arg15: memref<64x128xf32, #tpu.memory_space<vmem>>, %arg16: memref<8x128xf32, #tpu.memory_space<vmem>>) attributes {dimension_semantics = [#tpu.dimension_semantics<parallel>, #tpu.dimension_semantics<arbitrary>], iteration_bounds = array<i64: 1, 1>, scalar_prefetch = 0 : i64, scratch_operands = 3 : i64, tpu.core_type = #tpu.core_type<tc>, window_params = [{transform_indices = @transform_0, window_bounds = array<i64: 1, 64, 17>}, {pipeline_mode = #tpu.pipeline_mode<synchronous>, transform_indices = @transform_1, window_bounds = array<i64: 17, 64>}, {pipeline_mode = #tpu.pipeline_mode<synchronous>, transform_indices = @transform_2, window_bounds = array<i64: 1, 64>}, {pipeline_mode = #tpu.pipeline_mode<synchronous>, transform_indices = @transform_3, window_bounds = array<i64: 64, 384>}, {pipeline_mode = #tpu.pipeline_mode<synchronous>, transform_indices = @transform_4, window_bounds = array<i64: 1, 384>}, {pipeline_mode = #tpu.pipeline_mode<synchronous>, transform_indices = @transform_5, window_bounds = array<i64: 128, 384>}, {pipeline_mode = #tpu.pipeline_mode<synchronous>, transform_indices = @transform_6, window_bounds = array<i64: 1, 384>}, {pipeline_mode = #tpu.pipeline_mode<synchronous>, transform_indices = @transform_7, window_bounds = array<i64: 128, 128>}, {pipeline_mode = #tpu.pipeline_mode<synchronous>, transform_indices = @transform_8, window_bounds = array<i64: 1, 128>}, {pipeline_mode = #tpu.pipeline_mode<synchronous>, transform_indices = @transform_9, window_bounds = array<i64: 128, 128>}, {pipeline_mode = #tpu.pipeline_mode<synchronous>, transform_indices = @transform_10, window_bounds = array<i64: 1, 128>}, {transform_indices = @transform_11, window_bounds = array<i64: 1, 64, 128>}]} {
    %c0_i32 = arith.constant 0 : i32
    %0 = arith.cmpi eq, %arg1, %c0_i32 : i32
    %1 = arith.extui %0 : i1 to i32
    %c0_i32_0 = arith.constant 0 : i32
    %2 = arith.cmpi ne, %1, %c0_i32_0 : i32
    scf.if %2 {
      %cst_128 = arith.constant 0.000000e+00 : f32
      %324 = vector.broadcast %cst_128 : f32 to vector<8x128xf32>
      %c0_129 = arith.constant 0 : index
      %c0_130 = arith.constant 0 : index
      %325 = vector.load %arg16[%c0_129, %c0_130] : memref<8x128xf32, #tpu.memory_space<vmem>>, vector<8x128xf32>
      tpu.vector_store %arg16[%c0_129, %c0_130], %324 {strides = array<i32>} : memref<8x128xf32, #tpu.memory_space<vmem>>, vector<8x128xf32>,
    } else {
    }
    %c0 = arith.constant 0 : index
    %c0_1 = arith.constant 0 : index
    %c0_2 = arith.constant 0 : index
    %3 = vector.load %arg2[%c0, %c0_1, %c0_2] : memref<1x64x17xf32, #tpu.memory_space<vmem>>, vector<1x64x17xf32>
    %4 = vector.shape_cast %3 : vector<1x64x17xf32> to vector<64x17xf32>
    %5 = arith.truncf %4 : vector<64x17xf32> to vector<64x17xbf16>
    %c0_3 = arith.constant 0 : index
    %c0_4 = arith.constant 0 : index
    %6 = vector.load %arg3[%c0_3, %c0_4] : memref<17x64xbf16, #tpu.memory_space<vmem>>, vector<17x64xbf16>
    %cst = arith.constant dense<0.000000e+00> : vector<64x64xf32>
    %7 = tpu.matmul %5, %6, %cst {dimension_numbers = #tpu.dot_dimension_numbers<[1], [0], [0], [1], [0, 0, 1, 1], [], []>} : vector<64x17xbf16>, vector<17x64xbf16>, vector<64x64xf32> -> vector<64x64xf32>
    %c0_5 = arith.constant 0 : index
    %c0_6 = arith.constant 0 : index
    %8 = vector.load %arg4[%c0_5, %c0_6] : memref<1x64xf32, #tpu.memory_space<vmem>>, vector<1x64xf32>
    %9 = vector.broadcast %8 : vector<1x64xf32> to vector<64x64xf32>
    %10 = arith.addf %7, %9 : vector<64x64xf32>
    %cst_7 = arith.constant 0.000000e+00 : f32
    %11 = vector.broadcast %cst_7 : f32 to vector<64x64xf32>
    %12 = arith.maximumf %10, %11 : vector<64x64xf32>
    %13 = arith.truncf %12 : vector<64x64xf32> to vector<64x64xbf16>
    %c0_8 = arith.constant 0 : index
    %c0_9 = arith.constant 0 : index
    %14 = vector.load %arg5[%c0_8, %c0_9] : memref<64x384xbf16, #tpu.memory_space<vmem>>, vector<64x384xbf16>
    %cst_10 = arith.constant dense<0.000000e+00> : vector<64x384xf32>
    %15 = tpu.matmul %13, %14, %cst_10 {dimension_numbers = #tpu.dot_dimension_numbers<[1], [0], [0], [1], [0, 0, 1, 1], [], []>} : vector<64x64xbf16>, vector<64x384xbf16>, vector<64x384xf32> -> vector<64x384xf32>
    %c0_11 = arith.constant 0 : index
    %c0_12 = arith.constant 0 : index
    %16 = vector.load %arg6[%c0_11, %c0_12] : memref<1x384xf32, #tpu.memory_space<vmem>>, vector<1x384xf32>
    %17 = vector.broadcast %16 : vector<1x384xf32> to vector<64x384xf32>
    %18 = arith.addf %15, %17 : vector<64x384xf32>
    %c0_13 = arith.constant 0 : index
    %c0_14 = arith.constant 0 : index
    %19 = vector.load %arg14[%c0_13, %c0_14] : memref<64x384xf32, #tpu.memory_space<vmem>>, vector<64x384xf32>
    tpu.vector_store %arg14[%c0_13, %c0_14], %18 {strides = array<i32>} : memref<64x384xf32, #tpu.memory_space<vmem>>, vector<64x384xf32>,
    %c0_15 = arith.constant 0 : index
    %c0_16 = arith.constant 0 : index
    %20 = vector.load %arg8[%c0_15, %c0_16] : memref<1x384xf32, #tpu.memory_space<vmem>>, vector<1x384xf32>
    %21 = vector.shape_cast %20 : vector<1x384xf32> to vector<1x384xf32>
    %22 = vector.broadcast %21 : vector<1x384xf32> to vector<8x384xf32>
    %c0_17 = arith.constant 0 : index
    %c0_18 = arith.constant 0 : index
    %23 = vector.load %arg7[%c0_17, %c0_18] : memref<128x384xbf16, #tpu.memory_space<vmem>>, vector<128x384xbf16>
    %c0_19 = arith.constant 0 : index
    %c0_20 = arith.constant 0 : index
    %24 = vector.load %arg16[%c0_19, %c0_20] : memref<8x128xf32, #tpu.memory_space<vmem>>, vector<8x128xf32>
    %c0_21 = arith.constant 0 : index
    %c0_22 = arith.constant 0 : index
    %25 = vector.load %arg14[%c0_21, %c0_22] : memref<64x384xf32, #tpu.memory_space<vmem>>, vector<8x384xf32>
    %26 = arith.truncf %24 : vector<8x128xf32> to vector<8x128xbf16>
    %cst_23 = arith.constant dense<0.000000e+00> : vector<8x384xf32>
    %27 = tpu.matmul %26, %23, %cst_23 {dimension_numbers = #tpu.dot_dimension_numbers<[1], [0], [0], [1], [0, 0, 1, 1], [], []>} : vector<8x128xbf16>, vector<128x384xbf16>, vector<8x384xf32> -> vector<8x384xf32>
    %28 = arith.addf %27, %22 : vector<8x384xf32>
    %29 = vector.extract_strided_slice %25 {offsets = [0, 0], sizes = [8, 128], strides = [1, 1]} : vector<8x384xf32> to vector<8x128xf32>
    %30 = vector.extract_strided_slice %28 {offsets = [0, 0], sizes = [8, 128], strides = [1, 1]} : vector<8x384xf32> to vector<8x128xf32>
    %31 = arith.addf %29, %30 : vector<8x128xf32>
    %cst_24 = arith.constant 5.000000e-01 : f32
    %32 = vector.broadcast %cst_24 : f32 to vector<8x128xf32>
    %33 = arith.mulf %32, %31 : vector<8x128xf32>
    %34 = math.tanh %33 : vector<8x128xf32>
    %cst_25 = arith.constant 1.000000e+00 : f32
    %35 = vector.broadcast %cst_25 : f32 to vector<8x128xf32>
    %36 = arith.addf %34, %35 : vector<8x128xf32>
    %cst_26 = arith.constant 5.000000e-01 : f32
    %37 = vector.broadcast %cst_26 : f32 to vector<8x128xf32>
    %38 = arith.mulf %37, %36 : vector<8x128xf32>
    %39 = vector.extract_strided_slice %25 {offsets = [0, 128], sizes = [8, 128], strides = [1, 1]} : vector<8x384xf32> to vector<8x128xf32>
    %40 = vector.extract_strided_slice %28 {offsets = [0, 128], sizes = [8, 128], strides = [1, 1]} : vector<8x384xf32> to vector<8x128xf32>
    %41 = arith.addf %39, %40 : vector<8x128xf32>
    %cst_27 = arith.constant 5.000000e-01 : f32
    %42 = vector.broadcast %cst_27 : f32 to vector<8x128xf32>
    %43 = arith.mulf %42, %41 : vector<8x128xf32>
    %44 = math.tanh %43 : vector<8x128xf32>
    %cst_28 = arith.constant 1.000000e+00 : f32
    %45 = vector.broadcast %cst_28 : f32 to vector<8x128xf32>
    %46 = arith.addf %44, %45 : vector<8x128xf32>
    %cst_29 = arith.constant 5.000000e-01 : f32
    %47 = vector.broadcast %cst_29 : f32 to vector<8x128xf32>
    %48 = arith.mulf %47, %46 : vector<8x128xf32>
    %49 = vector.extract_strided_slice %25 {offsets = [0, 256], sizes = [8, 128], strides = [1, 1]} : vector<8x384xf32> to vector<8x128xf32>
    %50 = vector.extract_strided_slice %28 {offsets = [0, 256], sizes = [8, 128], strides = [1, 1]} : vector<8x384xf32> to vector<8x128xf32>
    %51 = arith.mulf %38, %50 : vector<8x128xf32>
    %52 = arith.addf %49, %51 : vector<8x128xf32>
    %53 = math.tanh %52 : vector<8x128xf32>
    %cst_30 = arith.constant 1.000000e+00 : f32
    %54 = vector.broadcast %cst_30 : f32 to vector<8x128xf32>
    %55 = arith.subf %54, %48 : vector<8x128xf32>
    %56 = arith.mulf %55, %53 : vector<8x128xf32>
    %57 = arith.mulf %48, %24 : vector<8x128xf32>
    %58 = arith.addf %56, %57 : vector<8x128xf32>
    %c0_31 = arith.constant 0 : index
    %c0_32 = arith.constant 0 : index
    %59 = vector.load %arg15[%c0_31, %c0_32] : memref<64x128xf32, #tpu.memory_space<vmem>>, vector<8x128xf32>
    tpu.vector_store %arg15[%c0_31, %c0_32], %58 {strides = array<i32>} : memref<64x128xf32, #tpu.memory_space<vmem>>, vector<8x128xf32>,
    %c8 = arith.constant 8 : index
    %c0_33 = arith.constant 0 : index
    %60 = vector.load %arg14[%c8, %c0_33] : memref<64x384xf32, #tpu.memory_space<vmem>>, vector<8x384xf32>
    %61 = arith.truncf %58 : vector<8x128xf32> to vector<8x128xbf16>
    %cst_34 = arith.constant dense<0.000000e+00> : vector<8x384xf32>
    %62 = tpu.matmul %61, %23, %cst_34 {dimension_numbers = #tpu.dot_dimension_numbers<[1], [0], [0], [1], [0, 0, 1, 1], [], []>} : vector<8x128xbf16>, vector<128x384xbf16>, vector<8x384xf32> -> vector<8x384xf32>
    %63 = arith.addf %62, %22 : vector<8x384xf32>
    %64 = vector.extract_strided_slice %60 {offsets = [0, 0], sizes = [8, 128], strides = [1, 1]} : vector<8x384xf32> to vector<8x128xf32>
    %65 = vector.extract_strided_slice %63 {offsets = [0, 0], sizes = [8, 128], strides = [1, 1]} : vector<8x384xf32> to vector<8x128xf32>
    %66 = arith.addf %64, %65 : vector<8x128xf32>
    %cst_35 = arith.constant 5.000000e-01 : f32
    %67 = vector.broadcast %cst_35 : f32 to vector<8x128xf32>
    %68 = arith.mulf %67, %66 : vector<8x128xf32>
    %69 = math.tanh %68 : vector<8x128xf32>
    %cst_36 = arith.constant 1.000000e+00 : f32
    %70 = vector.broadcast %cst_36 : f32 to vector<8x128xf32>
    %71 = arith.addf %69, %70 : vector<8x128xf32>
    %cst_37 = arith.constant 5.000000e-01 : f32
    %72 = vector.broadcast %cst_37 : f32 to vector<8x128xf32>
    %73 = arith.mulf %72, %71 : vector<8x128xf32>
    %74 = vector.extract_strided_slice %60 {offsets = [0, 128], sizes = [8, 128], strides = [1, 1]} : vector<8x384xf32> to vector<8x128xf32>
    %75 = vector.extract_strided_slice %63 {offsets = [0, 128], sizes = [8, 128], strides = [1, 1]} : vector<8x384xf32> to vector<8x128xf32>
    %76 = arith.addf %74, %75 : vector<8x128xf32>
    %cst_38 = arith.constant 5.000000e-01 : f32
    %77 = vector.broadcast %cst_38 : f32 to vector<8x128xf32>
    %78 = arith.mulf %77, %76 : vector<8x128xf32>
    %79 = math.tanh %78 : vector<8x128xf32>
    %cst_39 = arith.constant 1.000000e+00 : f32
    %80 = vector.broadcast %cst_39 : f32 to vector<8x128xf32>
    %81 = arith.addf %79, %80 : vector<8x128xf32>
    %cst_40 = arith.constant 5.000000e-01 : f32
    %82 = vector.broadcast %cst_40 : f32 to vector<8x128xf32>
    %83 = arith.mulf %82, %81 : vector<8x128xf32>
    %84 = vector.extract_strided_slice %60 {offsets = [0, 256], sizes = [8, 128], strides = [1, 1]} : vector<8x384xf32> to vector<8x128xf32>
    %85 = vector.extract_strided_slice %63 {offsets = [0, 256], sizes = [8, 128], strides = [1, 1]} : vector<8x384xf32> to vector<8x128xf32>
    %86 = arith.mulf %73, %85 : vector<8x128xf32>
    %87 = arith.addf %84, %86 : vector<8x128xf32>
    %88 = math.tanh %87 : vector<8x128xf32>
    %cst_41 = arith.constant 1.000000e+00 : f32
    %89 = vector.broadcast %cst_41 : f32 to vector<8x128xf32>
    %90 = arith.subf %89, %83 : vector<8x128xf32>
    %91 = arith.mulf %90, %88 : vector<8x128xf32>
    %92 = arith.mulf %83, %58 : vector<8x128xf32>
    %93 = arith.addf %91, %92 : vector<8x128xf32>
    %c8_42 = arith.constant 8 : index
    %c0_43 = arith.constant 0 : index
    %94 = vector.load %arg15[%c8_42, %c0_43] : memref<64x128xf32, #tpu.memory_space<vmem>>, vector<8x128xf32>
    tpu.vector_store %arg15[%c8_42, %c0_43], %93 {strides = array<i32>} : memref<64x128xf32, #tpu.memory_space<vmem>>, vector<8x128xf32>,
    %c16 = arith.constant 16 : index
    %c0_44 = arith.constant 0 : index
    %95 = vector.load %arg14[%c16, %c0_44] : memref<64x384xf32, #tpu.memory_space<vmem>>, vector<8x384xf32>
    %96 = arith.truncf %93 : vector<8x128xf32> to vector<8x128xbf16>
    %cst_45 = arith.constant dense<0.000000e+00> : vector<8x384xf32>
    %97 = tpu.matmul %96, %23, %cst_45 {dimension_numbers = #tpu.dot_dimension_numbers<[1], [0], [0], [1], [0, 0, 1, 1], [], []>} : vector<8x128xbf16>, vector<128x384xbf16>, vector<8x384xf32> -> vector<8x384xf32>
    %98 = arith.addf %97, %22 : vector<8x384xf32>
    %99 = vector.extract_strided_slice %95 {offsets = [0, 0], sizes = [8, 128], strides = [1, 1]} : vector<8x384xf32> to vector<8x128xf32>
    %100 = vector.extract_strided_slice %98 {offsets = [0, 0], sizes = [8, 128], strides = [1, 1]} : vector<8x384xf32> to vector<8x128xf32>
    %101 = arith.addf %99, %100 : vector<8x128xf32>
    %cst_46 = arith.constant 5.000000e-01 : f32
    %102 = vector.broadcast %cst_46 : f32 to vector<8x128xf32>
    %103 = arith.mulf %102, %101 : vector<8x128xf32>
    %104 = math.tanh %103 : vector<8x128xf32>
    %cst_47 = arith.constant 1.000000e+00 : f32
    %105 = vector.broadcast %cst_47 : f32 to vector<8x128xf32>
    %106 = arith.addf %104, %105 : vector<8x128xf32>
    %cst_48 = arith.constant 5.000000e-01 : f32
    %107 = vector.broadcast %cst_48 : f32 to vector<8x128xf32>
    %108 = arith.mulf %107, %106 : vector<8x128xf32>
    %109 = vector.extract_strided_slice %95 {offsets = [0, 128], sizes = [8, 128], strides = [1, 1]} : vector<8x384xf32> to vector<8x128xf32>
    %110 = vector.extract_strided_slice %98 {offsets = [0, 128], sizes = [8, 128], strides = [1, 1]} : vector<8x384xf32> to vector<8x128xf32>
    %111 = arith.addf %109, %110 : vector<8x128xf32>
    %cst_49 = arith.constant 5.000000e-01 : f32
    %112 = vector.broadcast %cst_49 : f32 to vector<8x128xf32>
    %113 = arith.mulf %112, %111 : vector<8x128xf32>
    %114 = math.tanh %113 : vector<8x128xf32>
    %cst_50 = arith.constant 1.000000e+00 : f32
    %115 = vector.broadcast %cst_50 : f32 to vector<8x128xf32>
    %116 = arith.addf %114, %115 : vector<8x128xf32>
    %cst_51 = arith.constant 5.000000e-01 : f32
    %117 = vector.broadcast %cst_51 : f32 to vector<8x128xf32>
    %118 = arith.mulf %117, %116 : vector<8x128xf32>
    %119 = vector.extract_strided_slice %95 {offsets = [0, 256], sizes = [8, 128], strides = [1, 1]} : vector<8x384xf32> to vector<8x128xf32>
    %120 = vector.extract_strided_slice %98 {offsets = [0, 256], sizes = [8, 128], strides = [1, 1]} : vector<8x384xf32> to vector<8x128xf32>
    %121 = arith.mulf %108, %120 : vector<8x128xf32>
    %122 = arith.addf %119, %121 : vector<8x128xf32>
    %123 = math.tanh %122 : vector<8x128xf32>
    %cst_52 = arith.constant 1.000000e+00 : f32
    %124 = vector.broadcast %cst_52 : f32 to vector<8x128xf32>
    %125 = arith.subf %124, %118 : vector<8x128xf32>
    %126 = arith.mulf %125, %123 : vector<8x128xf32>
    %127 = arith.mulf %118, %93 : vector<8x128xf32>
    %128 = arith.addf %126, %127 : vector<8x128xf32>
    %c16_53 = arith.constant 16 : index
    %c0_54 = arith.constant 0 : index
    %129 = vector.load %arg15[%c16_53, %c0_54] : memref<64x128xf32, #tpu.memory_space<vmem>>, vector<8x128xf32>
    tpu.vector_store %arg15[%c16_53, %c0_54], %128 {strides = array<i32>} : memref<64x128xf32, #tpu.memory_space<vmem>>, vector<8x128xf32>,
    %c24 = arith.constant 24 : index
    %c0_55 = arith.constant 0 : index
    %130 = vector.load %arg14[%c24, %c0_55] : memref<64x384xf32, #tpu.memory_space<vmem>>, vector<8x384xf32>
    %131 = arith.truncf %128 : vector<8x128xf32> to vector<8x128xbf16>
    %cst_56 = arith.constant dense<0.000000e+00> : vector<8x384xf32>
    %132 = tpu.matmul %131, %23, %cst_56 {dimension_numbers = #tpu.dot_dimension_numbers<[1], [0], [0], [1], [0, 0, 1, 1], [], []>} : vector<8x128xbf16>, vector<128x384xbf16>, vector<8x384xf32> -> vector<8x384xf32>
    %133 = arith.addf %132, %22 : vector<8x384xf32>
    %134 = vector.extract_strided_slice %130 {offsets = [0, 0], sizes = [8, 128], strides = [1, 1]} : vector<8x384xf32> to vector<8x128xf32>
    %135 = vector.extract_strided_slice %133 {offsets = [0, 0], sizes = [8, 128], strides = [1, 1]} : vector<8x384xf32> to vector<8x128xf32>
    %136 = arith.addf %134, %135 : vector<8x128xf32>
    %cst_57 = arith.constant 5.000000e-01 : f32
    %137 = vector.broadcast %cst_57 : f32 to vector<8x128xf32>
    %138 = arith.mulf %137, %136 : vector<8x128xf32>
    %139 = math.tanh %138 : vector<8x128xf32>
    %cst_58 = arith.constant 1.000000e+00 : f32
    %140 = vector.broadcast %cst_58 : f32 to vector<8x128xf32>
    %141 = arith.addf %139, %140 : vector<8x128xf32>
    %cst_59 = arith.constant 5.000000e-01 : f32
    %142 = vector.broadcast %cst_59 : f32 to vector<8x128xf32>
    %143 = arith.mulf %142, %141 : vector<8x128xf32>
    %144 = vector.extract_strided_slice %130 {offsets = [0, 128], sizes = [8, 128], strides = [1, 1]} : vector<8x384xf32> to vector<8x128xf32>
    %145 = vector.extract_strided_slice %133 {offsets = [0, 128], sizes = [8, 128], strides = [1, 1]} : vector<8x384xf32> to vector<8x128xf32>
    %146 = arith.addf %144, %145 : vector<8x128xf32>
    %cst_60 = arith.constant 5.000000e-01 : f32
    %147 = vector.broadcast %cst_60 : f32 to vector<8x128xf32>
    %148 = arith.mulf %147, %146 : vector<8x128xf32>
    %149 = math.tanh %148 : vector<8x128xf32>
    %cst_61 = arith.constant 1.000000e+00 : f32
    %150 = vector.broadcast %cst_61 : f32 to vector<8x128xf32>
    %151 = arith.addf %149, %150 : vector<8x128xf32>
    %cst_62 = arith.constant 5.000000e-01 : f32
    %152 = vector.broadcast %cst_62 : f32 to vector<8x128xf32>
    %153 = arith.mulf %152, %151 : vector<8x128xf32>
    %154 = vector.extract_strided_slice %130 {offsets = [0, 256], sizes = [8, 128], strides = [1, 1]} : vector<8x384xf32> to vector<8x128xf32>
    %155 = vector.extract_strided_slice %133 {offsets = [0, 256], sizes = [8, 128], strides = [1, 1]} : vector<8x384xf32> to vector<8x128xf32>
    %156 = arith.mulf %143, %155 : vector<8x128xf32>
    %157 = arith.addf %154, %156 : vector<8x128xf32>
    %158 = math.tanh %157 : vector<8x128xf32>
    %cst_63 = arith.constant 1.000000e+00 : f32
    %159 = vector.broadcast %cst_63 : f32 to vector<8x128xf32>
    %160 = arith.subf %159, %153 : vector<8x128xf32>
    %161 = arith.mulf %160, %158 : vector<8x128xf32>
    %162 = arith.mulf %153, %128 : vector<8x128xf32>
    %163 = arith.addf %161, %162 : vector<8x128xf32>
    %c24_64 = arith.constant 24 : index
    %c0_65 = arith.constant 0 : index
    %164 = vector.load %arg15[%c24_64, %c0_65] : memref<64x128xf32, #tpu.memory_space<vmem>>, vector<8x128xf32>
    tpu.vector_store %arg15[%c24_64, %c0_65], %163 {strides = array<i32>} : memref<64x128xf32, #tpu.memory_space<vmem>>, vector<8x128xf32>,
    %c32 = arith.constant 32 : index
    %c0_66 = arith.constant 0 : index
    %165 = vector.load %arg14[%c32, %c0_66] : memref<64x384xf32, #tpu.memory_space<vmem>>, vector<8x384xf32>
    %166 = arith.truncf %163 : vector<8x128xf32> to vector<8x128xbf16>
    %cst_67 = arith.constant dense<0.000000e+00> : vector<8x384xf32>
    %167 = tpu.matmul %166, %23, %cst_67 {dimension_numbers = #tpu.dot_dimension_numbers<[1], [0], [0], [1], [0, 0, 1, 1], [], []>} : vector<8x128xbf16>, vector<128x384xbf16>, vector<8x384xf32> -> vector<8x384xf32>
    %168 = arith.addf %167, %22 : vector<8x384xf32>
    %169 = vector.extract_strided_slice %165 {offsets = [0, 0], sizes = [8, 128], strides = [1, 1]} : vector<8x384xf32> to vector<8x128xf32>
    %170 = vector.extract_strided_slice %168 {offsets = [0, 0], sizes = [8, 128], strides = [1, 1]} : vector<8x384xf32> to vector<8x128xf32>
    %171 = arith.addf %169, %170 : vector<8x128xf32>
    %cst_68 = arith.constant 5.000000e-01 : f32
    %172 = vector.broadcast %cst_68 : f32 to vector<8x128xf32>
    %173 = arith.mulf %172, %171 : vector<8x128xf32>
    %174 = math.tanh %173 : vector<8x128xf32>
    %cst_69 = arith.constant 1.000000e+00 : f32
    %175 = vector.broadcast %cst_69 : f32 to vector<8x128xf32>
    %176 = arith.addf %174, %175 : vector<8x128xf32>
    %cst_70 = arith.constant 5.000000e-01 : f32
    %177 = vector.broadcast %cst_70 : f32 to vector<8x128xf32>
    %178 = arith.mulf %177, %176 : vector<8x128xf32>
    %179 = vector.extract_strided_slice %165 {offsets = [0, 128], sizes = [8, 128], strides = [1, 1]} : vector<8x384xf32> to vector<8x128xf32>
    %180 = vector.extract_strided_slice %168 {offsets = [0, 128], sizes = [8, 128], strides = [1, 1]} : vector<8x384xf32> to vector<8x128xf32>
    %181 = arith.addf %179, %180 : vector<8x128xf32>
    %cst_71 = arith.constant 5.000000e-01 : f32
    %182 = vector.broadcast %cst_71 : f32 to vector<8x128xf32>
    %183 = arith.mulf %182, %181 : vector<8x128xf32>
    %184 = math.tanh %183 : vector<8x128xf32>
    %cst_72 = arith.constant 1.000000e+00 : f32
    %185 = vector.broadcast %cst_72 : f32 to vector<8x128xf32>
    %186 = arith.addf %184, %185 : vector<8x128xf32>
    %cst_73 = arith.constant 5.000000e-01 : f32
    %187 = vector.broadcast %cst_73 : f32 to vector<8x128xf32>
    %188 = arith.mulf %187, %186 : vector<8x128xf32>
    %189 = vector.extract_strided_slice %165 {offsets = [0, 256], sizes = [8, 128], strides = [1, 1]} : vector<8x384xf32> to vector<8x128xf32>
    %190 = vector.extract_strided_slice %168 {offsets = [0, 256], sizes = [8, 128], strides = [1, 1]} : vector<8x384xf32> to vector<8x128xf32>
    %191 = arith.mulf %178, %190 : vector<8x128xf32>
    %192 = arith.addf %189, %191 : vector<8x128xf32>
    %193 = math.tanh %192 : vector<8x128xf32>
    %cst_74 = arith.constant 1.000000e+00 : f32
    %194 = vector.broadcast %cst_74 : f32 to vector<8x128xf32>
    %195 = arith.subf %194, %188 : vector<8x128xf32>
    %196 = arith.mulf %195, %193 : vector<8x128xf32>
    %197 = arith.mulf %188, %163 : vector<8x128xf32>
    %198 = arith.addf %196, %197 : vector<8x128xf32>
    %c32_75 = arith.constant 32 : index
    %c0_76 = arith.constant 0 : index
    %199 = vector.load %arg15[%c32_75, %c0_76] : memref<64x128xf32, #tpu.memory_space<vmem>>, vector<8x128xf32>
    tpu.vector_store %arg15[%c32_75, %c0_76], %198 {strides = array<i32>} : memref<64x128xf32, #tpu.memory_space<vmem>>, vector<8x128xf32>,
    %c40 = arith.constant 40 : index
    %c0_77 = arith.constant 0 : index
    %200 = vector.load %arg14[%c40, %c0_77] : memref<64x384xf32, #tpu.memory_space<vmem>>, vector<8x384xf32>
    %201 = arith.truncf %198 : vector<8x128xf32> to vector<8x128xbf16>
    %cst_78 = arith.constant dense<0.000000e+00> : vector<8x384xf32>
    %202 = tpu.matmul %201, %23, %cst_78 {dimension_numbers = #tpu.dot_dimension_numbers<[1], [0], [0], [1], [0, 0, 1, 1], [], []>} : vector<8x128xbf16>, vector<128x384xbf16>, vector<8x384xf32> -> vector<8x384xf32>
    %203 = arith.addf %202, %22 : vector<8x384xf32>
    %204 = vector.extract_strided_slice %200 {offsets = [0, 0], sizes = [8, 128], strides = [1, 1]} : vector<8x384xf32> to vector<8x128xf32>
    %205 = vector.extract_strided_slice %203 {offsets = [0, 0], sizes = [8, 128], strides = [1, 1]} : vector<8x384xf32> to vector<8x128xf32>
    %206 = arith.addf %204, %205 : vector<8x128xf32>
    %cst_79 = arith.constant 5.000000e-01 : f32
    %207 = vector.broadcast %cst_79 : f32 to vector<8x128xf32>
    %208 = arith.mulf %207, %206 : vector<8x128xf32>
    %209 = math.tanh %208 : vector<8x128xf32>
    %cst_80 = arith.constant 1.000000e+00 : f32
    %210 = vector.broadcast %cst_80 : f32 to vector<8x128xf32>
    %211 = arith.addf %209, %210 : vector<8x128xf32>
    %cst_81 = arith.constant 5.000000e-01 : f32
    %212 = vector.broadcast %cst_81 : f32 to vector<8x128xf32>
    %213 = arith.mulf %212, %211 : vector<8x128xf32>
    %214 = vector.extract_strided_slice %200 {offsets = [0, 128], sizes = [8, 128], strides = [1, 1]} : vector<8x384xf32> to vector<8x128xf32>
    %215 = vector.extract_strided_slice %203 {offsets = [0, 128], sizes = [8, 128], strides = [1, 1]} : vector<8x384xf32> to vector<8x128xf32>
    %216 = arith.addf %214, %215 : vector<8x128xf32>
    %cst_82 = arith.constant 5.000000e-01 : f32
    %217 = vector.broadcast %cst_82 : f32 to vector<8x128xf32>
    %218 = arith.mulf %217, %216 : vector<8x128xf32>
    %219 = math.tanh %218 : vector<8x128xf32>
    %cst_83 = arith.constant 1.000000e+00 : f32
    %220 = vector.broadcast %cst_83 : f32 to vector<8x128xf32>
    %221 = arith.addf %219, %220 : vector<8x128xf32>
    %cst_84 = arith.constant 5.000000e-01 : f32
    %222 = vector.broadcast %cst_84 : f32 to vector<8x128xf32>
    %223 = arith.mulf %222, %221 : vector<8x128xf32>
    %224 = vector.extract_strided_slice %200 {offsets = [0, 256], sizes = [8, 128], strides = [1, 1]} : vector<8x384xf32> to vector<8x128xf32>
    %225 = vector.extract_strided_slice %203 {offsets = [0, 256], sizes = [8, 128], strides = [1, 1]} : vector<8x384xf32> to vector<8x128xf32>
    %226 = arith.mulf %213, %225 : vector<8x128xf32>
    %227 = arith.addf %224, %226 : vector<8x128xf32>
    %228 = math.tanh %227 : vector<8x128xf32>
    %cst_85 = arith.constant 1.000000e+00 : f32
    %229 = vector.broadcast %cst_85 : f32 to vector<8x128xf32>
    %230 = arith.subf %229, %223 : vector<8x128xf32>
    %231 = arith.mulf %230, %228 : vector<8x128xf32>
    %232 = arith.mulf %223, %198 : vector<8x128xf32>
    %233 = arith.addf %231, %232 : vector<8x128xf32>
    %c40_86 = arith.constant 40 : index
    %c0_87 = arith.constant 0 : index
    %234 = vector.load %arg15[%c40_86, %c0_87] : memref<64x128xf32, #tpu.memory_space<vmem>>, vector<8x128xf32>
    tpu.vector_store %arg15[%c40_86, %c0_87], %233 {strides = array<i32>} : memref<64x128xf32, #tpu.memory_space<vmem>>, vector<8x128xf32>,
    %c48 = arith.constant 48 : index
    %c0_88 = arith.constant 0 : index
    %235 = vector.load %arg14[%c48, %c0_88] : memref<64x384xf32, #tpu.memory_space<vmem>>, vector<8x384xf32>
    %236 = arith.truncf %233 : vector<8x128xf32> to vector<8x128xbf16>
    %cst_89 = arith.constant dense<0.000000e+00> : vector<8x384xf32>
    %237 = tpu.matmul %236, %23, %cst_89 {dimension_numbers = #tpu.dot_dimension_numbers<[1], [0], [0], [1], [0, 0, 1, 1], [], []>} : vector<8x128xbf16>, vector<128x384xbf16>, vector<8x384xf32> -> vector<8x384xf32>
    %238 = arith.addf %237, %22 : vector<8x384xf32>
    %239 = vector.extract_strided_slice %235 {offsets = [0, 0], sizes = [8, 128], strides = [1, 1]} : vector<8x384xf32> to vector<8x128xf32>
    %240 = vector.extract_strided_slice %238 {offsets = [0, 0], sizes = [8, 128], strides = [1, 1]} : vector<8x384xf32> to vector<8x128xf32>
    %241 = arith.addf %239, %240 : vector<8x128xf32>
    %cst_90 = arith.constant 5.000000e-01 : f32
    %242 = vector.broadcast %cst_90 : f32 to vector<8x128xf32>
    %243 = arith.mulf %242, %241 : vector<8x128xf32>
    %244 = math.tanh %243 : vector<8x128xf32>
    %cst_91 = arith.constant 1.000000e+00 : f32
    %245 = vector.broadcast %cst_91 : f32 to vector<8x128xf32>
    %246 = arith.addf %244, %245 : vector<8x128xf32>
    %cst_92 = arith.constant 5.000000e-01 : f32
    %247 = vector.broadcast %cst_92 : f32 to vector<8x128xf32>
    %248 = arith.mulf %247, %246 : vector<8x128xf32>
    %249 = vector.extract_strided_slice %235 {offsets = [0, 128], sizes = [8, 128], strides = [1, 1]} : vector<8x384xf32> to vector<8x128xf32>
    %250 = vector.extract_strided_slice %238 {offsets = [0, 128], sizes = [8, 128], strides = [1, 1]} : vector<8x384xf32> to vector<8x128xf32>
    %251 = arith.addf %249, %250 : vector<8x128xf32>
    %cst_93 = arith.constant 5.000000e-01 : f32
    %252 = vector.broadcast %cst_93 : f32 to vector<8x128xf32>
    %253 = arith.mulf %252, %251 : vector<8x128xf32>
    %254 = math.tanh %253 : vector<8x128xf32>
    %cst_94 = arith.constant 1.000000e+00 : f32
    %255 = vector.broadcast %cst_94 : f32 to vector<8x128xf32>
    %256 = arith.addf %254, %255 : vector<8x128xf32>
    %cst_95 = arith.constant 5.000000e-01 : f32
    %257 = vector.broadcast %cst_95 : f32 to vector<8x128xf32>
    %258 = arith.mulf %257, %256 : vector<8x128xf32>
    %259 = vector.extract_strided_slice %235 {offsets = [0, 256], sizes = [8, 128], strides = [1, 1]} : vector<8x384xf32> to vector<8x128xf32>
    %260 = vector.extract_strided_slice %238 {offsets = [0, 256], sizes = [8, 128], strides = [1, 1]} : vector<8x384xf32> to vector<8x128xf32>
    %261 = arith.mulf %248, %260 : vector<8x128xf32>
    %262 = arith.addf %259, %261 : vector<8x128xf32>
    %263 = math.tanh %262 : vector<8x128xf32>
    %cst_96 = arith.constant 1.000000e+00 : f32
    %264 = vector.broadcast %cst_96 : f32 to vector<8x128xf32>
    %265 = arith.subf %264, %258 : vector<8x128xf32>
    %266 = arith.mulf %265, %263 : vector<8x128xf32>
    %267 = arith.mulf %258, %233 : vector<8x128xf32>
    %268 = arith.addf %266, %267 : vector<8x128xf32>
    %c48_97 = arith.constant 48 : index
    %c0_98 = arith.constant 0 : index
    %269 = vector.load %arg15[%c48_97, %c0_98] : memref<64x128xf32, #tpu.memory_space<vmem>>, vector<8x128xf32>
    tpu.vector_store %arg15[%c48_97, %c0_98], %268 {strides = array<i32>} : memref<64x128xf32, #tpu.memory_space<vmem>>, vector<8x128xf32>,
    %c56 = arith.constant 56 : index
    %c0_99 = arith.constant 0 : index
    %270 = vector.load %arg14[%c56, %c0_99] : memref<64x384xf32, #tpu.memory_space<vmem>>, vector<8x384xf32>
    %271 = arith.truncf %268 : vector<8x128xf32> to vector<8x128xbf16>
    %cst_100 = arith.constant dense<0.000000e+00> : vector<8x384xf32>
    %272 = tpu.matmul %271, %23, %cst_100 {dimension_numbers = #tpu.dot_dimension_numbers<[1], [0], [0], [1], [0, 0, 1, 1], [], []>} : vector<8x128xbf16>, vector<128x384xbf16>, vector<8x384xf32> -> vector<8x384xf32>
    %273 = arith.addf %272, %22 : vector<8x384xf32>
    %274 = vector.extract_strided_slice %270 {offsets = [0, 0], sizes = [8, 128], strides = [1, 1]} : vector<8x384xf32> to vector<8x128xf32>
    %275 = vector.extract_strided_slice %273 {offsets = [0, 0], sizes = [8, 128], strides = [1, 1]} : vector<8x384xf32> to vector<8x128xf32>
    %276 = arith.addf %274, %275 : vector<8x128xf32>
    %cst_101 = arith.constant 5.000000e-01 : f32
    %277 = vector.broadcast %cst_101 : f32 to vector<8x128xf32>
    %278 = arith.mulf %277, %276 : vector<8x128xf32>
    %279 = math.tanh %278 : vector<8x128xf32>
    %cst_102 = arith.constant 1.000000e+00 : f32
    %280 = vector.broadcast %cst_102 : f32 to vector<8x128xf32>
    %281 = arith.addf %279, %280 : vector<8x128xf32>
    %cst_103 = arith.constant 5.000000e-01 : f32
    %282 = vector.broadcast %cst_103 : f32 to vector<8x128xf32>
    %283 = arith.mulf %282, %281 : vector<8x128xf32>
    %284 = vector.extract_strided_slice %270 {offsets = [0, 128], sizes = [8, 128], strides = [1, 1]} : vector<8x384xf32> to vector<8x128xf32>
    %285 = vector.extract_strided_slice %273 {offsets = [0, 128], sizes = [8, 128], strides = [1, 1]} : vector<8x384xf32> to vector<8x128xf32>
    %286 = arith.addf %284, %285 : vector<8x128xf32>
    %cst_104 = arith.constant 5.000000e-01 : f32
    %287 = vector.broadcast %cst_104 : f32 to vector<8x128xf32>
    %288 = arith.mulf %287, %286 : vector<8x128xf32>
    %289 = math.tanh %288 : vector<8x128xf32>
    %cst_105 = arith.constant 1.000000e+00 : f32
    %290 = vector.broadcast %cst_105 : f32 to vector<8x128xf32>
    %291 = arith.addf %289, %290 : vector<8x128xf32>
    %cst_106 = arith.constant 5.000000e-01 : f32
    %292 = vector.broadcast %cst_106 : f32 to vector<8x128xf32>
    %293 = arith.mulf %292, %291 : vector<8x128xf32>
    %294 = vector.extract_strided_slice %270 {offsets = [0, 256], sizes = [8, 128], strides = [1, 1]} : vector<8x384xf32> to vector<8x128xf32>
    %295 = vector.extract_strided_slice %273 {offsets = [0, 256], sizes = [8, 128], strides = [1, 1]} : vector<8x384xf32> to vector<8x128xf32>
    %296 = arith.mulf %283, %295 : vector<8x128xf32>
    %297 = arith.addf %294, %296 : vector<8x128xf32>
    %298 = math.tanh %297 : vector<8x128xf32>
    %cst_107 = arith.constant 1.000000e+00 : f32
    %299 = vector.broadcast %cst_107 : f32 to vector<8x128xf32>
    %300 = arith.subf %299, %293 : vector<8x128xf32>
    %301 = arith.mulf %300, %298 : vector<8x128xf32>
    %302 = arith.mulf %293, %268 : vector<8x128xf32>
    %303 = arith.addf %301, %302 : vector<8x128xf32>
    %c56_108 = arith.constant 56 : index
    %c0_109 = arith.constant 0 : index
    %304 = vector.load %arg15[%c56_108, %c0_109] : memref<64x128xf32, #tpu.memory_space<vmem>>, vector<8x128xf32>
    tpu.vector_store %arg15[%c56_108, %c0_109], %303 {strides = array<i32>} : memref<64x128xf32, #tpu.memory_space<vmem>>, vector<8x128xf32>,
    %c0_110 = arith.constant 0 : index
    %c0_111 = arith.constant 0 : index
    %305 = vector.load %arg16[%c0_110, %c0_111] : memref<8x128xf32, #tpu.memory_space<vmem>>, vector<8x128xf32>
    tpu.vector_store %arg16[%c0_110, %c0_111], %303 {strides = array<i32>} : memref<8x128xf32, #tpu.memory_space<vmem>>, vector<8x128xf32>,
    %c0_112 = arith.constant 0 : index
    %c0_113 = arith.constant 0 : index
    %306 = vector.load %arg15[%c0_112, %c0_113] : memref<64x128xf32, #tpu.memory_space<vmem>>, vector<64x128xf32>
    %307 = arith.truncf %306 : vector<64x128xf32> to vector<64x128xbf16>
    %c0_114 = arith.constant 0 : index
    %c0_115 = arith.constant 0 : index
    %308 = vector.load %arg9[%c0_114, %c0_115] : memref<128x128xbf16, #tpu.memory_space<vmem>>, vector<128x128xbf16>
    %cst_116 = arith.constant dense<0.000000e+00> : vector<64x128xf32>
    %309 = tpu.matmul %307, %308, %cst_116 {dimension_numbers = #tpu.dot_dimension_numbers<[1], [0], [0], [1], [0, 0, 1, 1], [], []>} : vector<64x128xbf16>, vector<128x128xbf16>, vector<64x128xf32> -> vector<64x128xf32>
    %c0_117 = arith.constant 0 : index
    %c0_118 = arith.constant 0 : index
    %310 = vector.load %arg10[%c0_117, %c0_118] : memref<1x128xf32, #tpu.memory_space<vmem>>, vector<1x128xf32>
    %311 = vector.broadcast %310 : vector<1x128xf32> to vector<64x128xf32>
    %312 = arith.addf %309, %311 : vector<64x128xf32>
    %cst_119 = arith.constant 0.000000e+00 : f32
    %313 = vector.broadcast %cst_119 : f32 to vector<64x128xf32>
    %314 = arith.maximumf %312, %313 : vector<64x128xf32>
    %315 = arith.truncf %314 : vector<64x128xf32> to vector<64x128xbf16>
    %c0_120 = arith.constant 0 : index
    %c0_121 = arith.constant 0 : index
    %316 = vector.load %arg11[%c0_120, %c0_121] : memref<128x128xbf16, #tpu.memory_space<vmem>>, vector<128x128xbf16>
    %cst_122 = arith.constant dense<0.000000e+00> : vector<64x128xf32>
    %317 = tpu.matmul %315, %316, %cst_122 {dimension_numbers = #tpu.dot_dimension_numbers<[1], [0], [0], [1], [0, 0, 1, 1], [], []>} : vector<64x128xbf16>, vector<128x128xbf16>, vector<64x128xf32> -> vector<64x128xf32>
    %c0_123 = arith.constant 0 : index
    %c0_124 = arith.constant 0 : index
    %318 = vector.load %arg12[%c0_123, %c0_124] : memref<1x128xf32, #tpu.memory_space<vmem>>, vector<1x128xf32>
    %319 = vector.broadcast %318 : vector<1x128xf32> to vector<64x128xf32>
    %320 = arith.addf %317, %319 : vector<64x128xf32>
    %c0_125 = arith.constant 0 : index
    %c0_126 = arith.constant 0 : index
    %c0_127 = arith.constant 0 : index
    %321 = vector.load %arg13[%c0_125, %c0_126, %c0_127] : memref<1x64x128xf32, #tpu.memory_space<vmem>>, vector<1x64x128xf32>
    %322 = vector.shape_cast %321 : vector<1x64x128xf32> to vector<64x128xf32>
    %323 = vector.shape_cast %320 : vector<64x128xf32> to vector<1x64x128xf32>
    tpu.vector_store %arg13[%c0_125, %c0_126, %c0_127], %323 {strides = array<i32>} : memref<1x64x128xf32, #tpu.memory_space<vmem>>, vector<1x64x128xf32>,
    return
  }
  func.func @transform_0(%arg0: i32, %arg1: i32) -> (i32, i32, i32) {
    %c0_i32 = arith.constant 0 : i32
    %c0_i32_0 = arith.constant 0 : i32
    return %arg0, %arg1, %c0_i32 : i32, i32, i32
  }
  func.func @transform_1(%arg0: i32, %arg1: i32) -> (i32, i32) {
    %c0_i32 = arith.constant 0 : i32
    %c0_i32_0 = arith.constant 0 : i32
    %c0_i32_1 = arith.constant 0 : i32
    return %c0_i32, %c0_i32_0 : i32, i32
  }
  func.func @transform_2(%arg0: i32, %arg1: i32) -> (i32, i32) {
    %c0_i32 = arith.constant 0 : i32
    %c0_i32_0 = arith.constant 0 : i32
    %c0_i32_1 = arith.constant 0 : i32
    return %c0_i32, %c0_i32_0 : i32, i32
  }
  func.func @transform_3(%arg0: i32, %arg1: i32) -> (i32, i32) {
    %c0_i32 = arith.constant 0 : i32
    %c0_i32_0 = arith.constant 0 : i32
    %c0_i32_1 = arith.constant 0 : i32
    return %c0_i32, %c0_i32_0 : i32, i32
  }
  func.func @transform_4(%arg0: i32, %arg1: i32) -> (i32, i32) {
    %c0_i32 = arith.constant 0 : i32
    %c0_i32_0 = arith.constant 0 : i32
    %c0_i32_1 = arith.constant 0 : i32
    return %c0_i32, %c0_i32_0 : i32, i32
  }
  func.func @transform_5(%arg0: i32, %arg1: i32) -> (i32, i32) {
    %c0_i32 = arith.constant 0 : i32
    %c0_i32_0 = arith.constant 0 : i32
    %c0_i32_1 = arith.constant 0 : i32
    return %c0_i32, %c0_i32_0 : i32, i32
  }
  func.func @transform_6(%arg0: i32, %arg1: i32) -> (i32, i32) {
    %c0_i32 = arith.constant 0 : i32
    %c0_i32_0 = arith.constant 0 : i32
    %c0_i32_1 = arith.constant 0 : i32
    return %c0_i32, %c0_i32_0 : i32, i32
  }
  func.func @transform_7(%arg0: i32, %arg1: i32) -> (i32, i32) {
    %c0_i32 = arith.constant 0 : i32
    %c0_i32_0 = arith.constant 0 : i32
    %c0_i32_1 = arith.constant 0 : i32
    return %c0_i32, %c0_i32_0 : i32, i32
  }
  func.func @transform_8(%arg0: i32, %arg1: i32) -> (i32, i32) {
    %c0_i32 = arith.constant 0 : i32
    %c0_i32_0 = arith.constant 0 : i32
    %c0_i32_1 = arith.constant 0 : i32
    return %c0_i32, %c0_i32_0 : i32, i32
  }
  func.func @transform_9(%arg0: i32, %arg1: i32) -> (i32, i32) {
    %c0_i32 = arith.constant 0 : i32
    %c0_i32_0 = arith.constant 0 : i32
    %c0_i32_1 = arith.constant 0 : i32
    return %c0_i32, %c0_i32_0 : i32, i32
  }
  func.func @transform_10(%arg0: i32, %arg1: i32) -> (i32, i32) {
    %c0_i32 = arith.constant 0 : i32
    %c0_i32_0 = arith.constant 0 : i32
    %c0_i32_1 = arith.constant 0 : i32
    return %c0_i32, %c0_i32_0 : i32, i32
  }
  func.func @transform_11(%arg0: i32, %arg1: i32) -> (i32, i32, i32) {
    %c0_i32 = arith.constant 0 : i32
    %c0_i32_0 = arith.constant 0 : i32
    return %arg0, %arg1, %c0_i32 : i32, i32, i32
  }
}

</mosaic_0001>

<llo_original>
// kernel: gru_actor_critic_forward.1
$region0: #{gru_actor_critic_forward.1}
  #allocation0 [shape = 'u32[]', space=smem, size = 0x4, offset = 0x4, fixed_abs, tag = 'smem constant byte address 0x4 - core index']
  #allocation1 [shape = 'u32[144,128]{1,0:T(1,128)}', space=vmem, size = 0x12000, scoped, tag = 'internal scratch']
  #allocation2 [shape = 'f32[64,384]{1,0:T(8,128)}', space=vmem, size = 0x18000, scoped, tag = 'scratch operand']
  #allocation3 [shape = 'f32[64,128]{1,0:T(8,128)}', space=vmem, size = 0x8000, scoped, tag = 'scratch operand']
  #allocation4 [shape = 'f32[8,128]{1,0:T(8,128)}', space=vmem, size = 0x1000, scoped, tag = 'scratch operand']
  %s0 = inlined_call_operand.vmem [shape: f32[1,64,17], index: 0, kind: input, shape index: {}]
  %s1 = inlined_call_operand.vmem [shape: bf16[17,64], index: 1, kind: input, shape index: {}]
  %s2 = inlined_call_operand.vmem [shape: f32[1,64], index: 2, kind: input, shape index: {}]
  %s3 = inlined_call_operand.vmem [shape: bf16[64,384], index: 3, kind: input, shape index: {}]
  %s4 = inlined_call_operand.vmem [shape: f32[1,384], index: 4, kind: input, shape index: {}]
  %s5 = inlined_call_operand.vmem [shape: bf16[128,384], index: 5, kind: input, shape index: {}]
  %s6 = inlined_call_operand.vmem [shape: f32[1,384], index: 6, kind: input, shape index: {}]
  %s7 = inlined_call_operand.vmem [shape: bf16[128,128], index: 7, kind: input, shape index: {}]
  %s8 = inlined_call_operand.vmem [shape: f32[1,128], index: 8, kind: input, shape index: {}]
  %s9 = inlined_call_operand.vmem [shape: bf16[128,128], index: 9, kind: input, shape index: {}]
  %s10 = inlined_call_operand.vmem [shape: f32[1,128], index: 10, kind: input, shape index: {}]
  %s11 = inlined_call_operand.vmem [shape: f32[1,64,128], index: 11, kind: output, shape index: {}]
  %s12 = sld [smem:[#allocation0]]
  $region58: #{gru_actor_critic_forward.1} parent=0
    _
  %s14 = ssub.s32 1, %s12
  %s15 = scalar_select 0, %s14, %s12
  // Predicated region
  $region2: #{gru_actor_critic_forward.1} parent=0 // pred_check
    _
  $region3: #{gru_actor_critic_forward.1} parent=0 // pred_check_branch
    %17 = sbr.rel (0) target = $region5
  $region4: #{gru_actor_critic_forward.1} parent=0 // pred_region
    _
  $region5: #{gru_actor_critic_forward.1} parent=0 // pred_fallthru
    _
  // Predicated region
  $region6: #{gru_actor_critic_forward.1} parent=0 // pred_check
    _
  $region7: #{gru_actor_critic_forward.1} parent=0 // pred_check_branch
    %19 = sbr.rel (0) target = $region9
  $region8: #{gru_actor_critic_forward.1} parent=0 // pred_region
    _
  $region9: #{gru_actor_critic_forward.1} parent=0 // pred_fallthru
    _
  // Predicated region
  $region10: #{gru_actor_critic_forward.1} parent=0 // pred_check
    _
  $region11: #{gru_actor_critic_forward.1} parent=0 // pred_check_branch
    %21 = sbr.rel (0) target = $region13
  $region12: #{gru_actor_critic_forward.1} parent=0 // pred_region
    _
  $region13: #{gru_actor_critic_forward.1} parent=0 // pred_fallthru
    _
  // Predicated region
  $region14: #{gru_actor_critic_forward.1} parent=0 // pred_check
    _
  $region15: #{gru_actor_critic_forward.1} parent=0 // pred_check_branch
    %23 = sbr.rel (0) target = $region17
  $region16: #{gru_actor_critic_forward.1} parent=0 // pred_region
    _
  $region17: #{gru_actor_critic_forward.1} parent=0 // pred_fallthru
    _
  // Predicated region
  $region18: #{gru_actor_critic_forward.1} parent=0 // pred_check
    _
  $region19: #{gru_actor_critic_forward.1} parent=0 // pred_check_branch
    %25 = sbr.rel (0) target = $region21
  $region20: #{gru_actor_critic_forward.1} parent=0 // pred_region
    _
  $region21: #{gru_actor_critic_forward.1} parent=0 // pred_fallthru
    _
  // Predicated region
  $region22: #{gru_actor_critic_forward.1} parent=0 // pred_check
    _
  $region23: #{gru_actor_critic_forward.1} parent=0 // pred_check_branch
    %27 = sbr.rel (0) target = $region25
  $region24: #{gru_actor_critic_forward.1} parent=0 // pred_region
    _
  $region25: #{gru_actor_critic_forward.1} parent=0 // pred_fallthru
    _
  // Predicated region
  $region26: #{gru_actor_critic_forward.1} parent=0 // pred_check
    _
  $region27: #{gru_actor_critic_forward.1} parent=0 // pred_check_branch
    %29 = sbr.rel (0) target = $region29
  $region28: #{gru_actor_critic_forward.1} parent=0 // pred_region
    _
  $region29: #{gru_actor_critic_forward.1} parent=0 // pred_fallthru
    _
  // Predicated region
  $region30: #{gru_actor_critic_forward.1} parent=0 // pred_check
    _
  $region31: #{gru_actor_critic_forward.1} parent=0 // pred_check_branch
    %31 = sbr.rel (0) target = $region33
  $region32: #{gru_actor_critic_forward.1} parent=0 // pred_region
    _
  $region33: #{gru_actor_critic_forward.1} parent=0 // pred_fallthru
    _
  // Predicated region
  $region34: #{gru_actor_critic_forward.1} parent=0 // pred_check
    _
  $region35: #{gru_actor_critic_forward.1} parent=0 // pred_check_branch
    %33 = sbr.rel (0) target = $region37
  $region36: #{gru_actor_critic_forward.1} parent=0 // pred_region
    _
  $region37: #{gru_actor_critic_forward.1} parent=0 // pred_fallthru
    _
  // Predicated region
  $region38: #{gru_actor_critic_forward.1} parent=0 // pred_check
    _
  $region39: #{gru_actor_critic_forward.1} parent=0 // pred_check_branch
    %35 = sbr.rel (0) target = $region41
  $region40: #{gru_actor_critic_forward.1} parent=0 // pred_region
    _
  $region41: #{gru_actor_critic_forward.1} parent=0 // pred_fallthru
    _
  // Predicated region
  $region42: #{gru_actor_critic_forward.1} parent=0 // pred_check
    _
  $region43: #{gru_actor_critic_forward.1} parent=0 // pred_check_branch
    %37 = sbr.rel (0) target = $region45
  $region44: #{gru_actor_critic_forward.1} parent=0 // pred_region
    _
  $region45: #{gru_actor_critic_forward.1} parent=0 // pred_fallthru
    _
  %p39 = scmp.eq.s32.totalorder 0, 0
  // Predicated region
  $region46: #{gru_actor_critic_forward.1} parent=0 // pred_check
    %p40 = pneg %p39
  $region47: #{gru_actor_critic_forward.1} parent=0 // pred_check_branch
    %42 = sbr.rel (%p40) target = $region49
  $region48: #{gru_actor_critic_forward.1} parent=0 // pred_region
    %43 = vst [vmem:[#allocation4] sm:$0xff] 0.0
  $region49: #{gru_actor_critic_forward.1} parent=0 // pred_fallthru
    _
  %v44 = vld [vmem:[%s0] sm:$0xff]
  %v45 = vld [vmem:[%s0 + $0x8] sm:$0xff]
  %v46 = vld [vmem:[%s0 + $0x10] sm:$0xff]
  %v47 = vld [vmem:[%s0 + $0x18] sm:$0xff]
  %v48 = vld [vmem:[%s0 + $0x20] sm:$0xff]
  %v49 = vld [vmem:[%s0 + $0x28] sm:$0xff]
  %v50 = vld [vmem:[%s0 + $0x30] sm:$0xff]
  %v51 = vld [vmem:[%s0 + $0x38] sm:$0xff]
  %v52 = vpack.c.bf16 %v45, %v44
  %v53 = vpack.c.bf16 %v47, %v46
  %v54 = vpack.c.bf16 %v49, %v48
  %v55 = vpack.c.bf16 %v51, %v50
  %v56 = vld [vmem:[%s1] sm:$0xf]
  %v57 = vld [vmem:[%s1 + $0x4] sm:$0xf]
  %v58 = vld [vmem:[%s1 + $0x8] sm:$0x1]
  %v59 = vld [vmem:[%s2] sm:$0x1]
  %v61 = vlaneseq
  %v62 = vshrl.u32 %v61, 7
  %v63 = vsub.s32 0, %v62
  %v64 = vrot.slane %v59, %v63
  %v69 = vunpack.c.l.b16 %v56
  %v70 = vunpack.c.l.b16 %v57
  %v71 = vunpack.c.l.b16 %v58
  %v72 = vpack.c.b16 %v70, %v69
  %v73 = vpack.c.b16 %v71, %v71
  %vm75 = vcmask 138240
  %v77 = vsel %vm75, %v52, 0
  %v80 = vsel %vm75, %v53, 0
  %v83 = vsel %vm75, %v54, 0
  %v86 = vsel %vm75, %v55, 0
  %vm88 = vcmask 1040384
  %v89 = vsel 0, 4294967295, 65535
  %v90 = vsel %vm88, %v89, 0
  %v92 = vand.u32 %v73, %v90
  %94 = vmatprep.subr.bf16.mxu0 0
  %95 = vmatpush1.bf16.msra.mxu0 %v72
  %96 = vmatprep.subr.bf16.mxu0 0
  %97 = vmatpush1.bf16.msra.mxu0 %v92
  %98 = vmatprep.subr.bf16.mxu0 0
  %99 = vmatpush1.bf16.msra.mxu0 0
  %100 = vmatprep.subr.bf16.mxu0 0
  %101 = vmatpush1.bf16.msra.mxu0 0
  %102 = vmatprep.subr.bf16.mxu0 0
  %103 = vmatpush1.bf16.msra.mxu0 0
  %104 = vmatprep.subr.bf16.mxu0 0
  %105 = vmatpush1.bf16.msra.mxu0 0
  %106 = vmatprep.subr.bf16.mxu0 0
  %107 = vmatpush1.bf16.msra.mxu0 0
  %108 = vmatprep.subr.bf16.mxu0 0
  %109 = vmatpush1.bf16.msra.mxu0 0
  %110 = vmatprep.subr.bf16.mxu0 0
  %111 = vmatpush1.bf16.msra.mxu0 0
  %112 = vmatprep.subr.bf16.mxu0 0
  %113 = vmatpush1.bf16.msra.mxu0 0
  %114 = vmatprep.subr.bf16.mxu0 0
  %115 = vmatpush1.bf16.msra.mxu0 0
  %116 = vmatprep.subr.bf16.mxu0 0
  %117 = vmatpush1.bf16.msra.mxu0 0
  %118 = vmatprep.subr.bf16.mxu0 0
  %119 = vmatpush1.bf16.msra.mxu0 0
  %120 = vmatprep.subr.bf16.mxu0 0
  %121 = vmatpush1.bf16.msra.mxu0 0
  %122 = vmatprep.subr.bf16.mxu0 0
  %123 = vmatpush1.bf16.msra.mxu0 0
  %124 = vmatprep.subr.bf16.mxu0 0
  %125 = vmatpush1.bf16.msra.mxu0 0
  %126 = vmatprep.mubr.bf16.mxu0 0
  %127 = vmatmul.mubr.bf16.gmra.mrb[0].mxu0 %v77
  %v128 = vpop.f32.mrb[0].mxu0
  %v129 = vadd.f32 %v64, %v128
  %v130 = vpop.f32.mrb[0].mxu0
  %v131 = vpop.f32.mrb[0].mxu0
  %v132 = vadd.f32 %v64, %v131
  %v133 = vpop.f32.mrb[0].mxu0
  %134 = vmatprep.mubr.bf16.mxu0 0
  %135 = vmatmul.mubr.bf16.gmra.mrb[0].mxu0 %v80
  %v136 = vpop.f32.mrb[0].mxu0
  %v137 = vadd.f32 %v64, %v136
  %v138 = vpop.f32.mrb[0].mxu0
  %v139 = vpop.f32.mrb[0].mxu0
  %v140 = vadd.f32 %v64, %v139
  %v141 = vpop.f32.mrb[0].mxu0
  %142 = vmatprep.mubr.bf16.mxu0 0
  %143 = vmatmul.mubr.bf16.gmra.mrb[0].mxu0 %v83
  %v144 = vpop.f32.mrb[0].mxu0
  %v145 = vadd.f32 %v64, %v144
  %v146 = vpop.f32.mrb[0].mxu0
  %v147 = vpop.f32.mrb[0].mxu0
  %v148 = vadd.f32 %v64, %v147
  %v149 = vpop.f32.mrb[0].mxu0
  %150 = vmatprep.mubr.bf16.mxu0 0
  %151 = vmatmul.mubr.bf16.gmra.mrb[0].mxu0 %v86
  %v152 = vpop.f32.mrb[0].mxu0
  %v153 = vadd.f32 %v64, %v152
  %v154 = vpop.f32.mrb[0].mxu0
  %v155 = vpop.f32.mrb[0].mxu0
  %v156 = vadd.f32 %v64, %v155
  %v157 = vpop.f32.mrb[0].mxu0
  %158 = vdwg.mxu0
  %v159 = vmax.f32 %v129, 0.0
  %v160 = vmax.f32 %v132, 0.0
  %v161 = vmax.f32 %v137, 0.0
  %v162 = vmax.f32 %v140, 0.0
  %v163 = vmax.f32 %v145, 0.0
  %v164 = vmax.f32 %v148, 0.0
  %v165 = vmax.f32 %v153, 0.0
  %v166 = vmax.f32 %v156, 0.0
  %v167 = vpack.c.bf16 %v160, %v159
  %v168 = vpack.c.bf16 %v162, %v161
  %v169 = vpack.c.bf16 %v164, %v163
  %v170 = vpack.c.bf16 %v166, %v165
  %v171 = vld [vmem:[%s3] sm:$0xff]
  %v172 = vld [vmem:[%s3 + $0x8] sm:$0xf]
  %v173 = vld [vmem:[%s3 + $0xc] sm:$0xff]
  %v174 = vld [vmem:[%s3 + $0x14] sm:$0xf]
  %v175 = vld [vmem:[%s3 + $0x18] sm:$0xff]
  %v176 = vld [vmem:[%s3 + $0x20] sm:$0xf]
  %v177 = vld [vmem:[%s3 + $0x24] sm:$0xff]
  %v178 = vld [vmem:[%s3 + $0x2c] sm:$0xf]
  %v179 = vld [vmem:[%s3 + $0x30] sm:$0xff]
  %v180 = vld [vmem:[%s3 + $0x38] sm:$0xf]
  %v181 = vld [vmem:[%s3 + $0x3c] sm:$0xff]
  %v182 = vld [vmem:[%s3 + $0x44] sm:$0xf]
  %v183 = vld [vmem:[%s3 + $0x48] sm:$0xff]
  %v184 = vld [vmem:[%s3 + $0x50] sm:$0xf]
  %v185 = vld [vmem:[%s3 + $0x54] sm:$0xff]
  %v186 = vld [vmem:[%s3 + $0x5c] sm:$0xf]
  %v187 = vld [vmem:[%s4] sm:$0x7]
  %v189 = vlaneseq
  %v190 = vshrl.u32 %v189, 7
  %v191 = vsub.s32 0, %v190
  %v192 = vrot.slane %v187, %v191
  %v193 = vlaneseq
  %v194 = vshrl.u32 %v193, 7
  %v195 = vsub.s32 1, %v194
  %v196 = vrot.slane %v187, %v195
  %v197 = vlaneseq
  %v198 = vshrl.u32 %v197, 7
  %v199 = vsub.s32 2, %v198
  %v200 = vrot.slane %v187, %v199
  %v220 = vunpack.c.l.b16 %v171
  %v221 = vunpack.c.h.b16 %v171
  %v222 = vunpack.c.l.b16 %v172
  %v223 = vunpack.c.l.b16 %v173
  %v224 = vunpack.c.h.b16 %v173
  %v225 = vunpack.c.l.b16 %v174
  %v226 = vunpack.c.l.b16 %v175
  %v227 = vunpack.c.h.b16 %v175
  %v228 = vunpack.c.l.b16 %v176
  %v229 = vunpack.c.l.b16 %v177
  %v230 = vunpack.c.h.b16 %v177
  %v231 = vunpack.c.l.b16 %v178
  %v232 = vunpack.c.l.b16 %v179
  %v233 = vunpack.c.h.b16 %v179
  %v234 = vunpack.c.l.b16 %v180
  %v235 = vunpack.c.l.b16 %v181
  %v236 = vunpack.c.h.b16 %v181
  %v237 = vunpack.c.l.b16 %v182
  %v238 = vunpack.c.l.b16 %v183
  %v239 = vunpack.c.h.b16 %v183
  %v240 = vunpack.c.l.b16 %v184
  %v241 = vunpack.c.l.b16 %v185
  %v242 = vunpack.c.h.b16 %v185
  %v243 = vunpack.c.l.b16 %v186
  %v244 = vpack.c.b16 %v223, %v220
  %v245 = vpack.c.b16 %v224, %v221
  %v246 = vpack.c.b16 %v225, %v222
  %v247 = vpack.c.b16 %v229, %v226
  %v248 = vpack.c.b16 %v230, %v227
  %v249 = vpack.c.b16 %v231, %v228
  %v250 = vpack.c.b16 %v235, %v232
  %v251 = vpack.c.b16 %v236, %v233
  %v252 = vpack.c.b16 %v237, %v234
  %v253 = vpack.c.b16 %v241, %v238
  %v254 = vpack.c.b16 %v242, %v239
  %v255 = vpack.c.b16 %v243, %v240
  %vm268 = vcmask 523264
  %v270 = vsel %vm268, %v167, 0
  %v273 = vsel %vm268, %v168, 0
  %v276 = vsel %vm268, %v169, 0
  %v279 = vsel %vm268, %v170, 0
  %281 = vmatprep.subr.bf16.mxu0 %v245
  %282 = vmatpush1.bf16.msra.mxu0 %v244
  %283 = vmatprep.subr.bf16.mxu0 %v248
  %284 = vmatpush1.bf16.msra.mxu0 %v247
  %285 = vmatprep.subr.bf16.mxu0 %v251
  %286 = vmatpush1.bf16.msra.mxu0 %v250
  %287 = vmatprep.subr.bf16.mxu0 %v254
  %288 = vmatpush1.bf16.msra.mxu0 %v253
  %289 = vmatprep.subr.bf16.mxu0 0
  %290 = vmatpush1.bf16.msra.mxu0 0
  %291 = vmatprep.subr.bf16.mxu0 0
  %292 = vmatpush1.bf16.msra.mxu0 0
  %293 = vmatprep.subr.bf16.mxu0 0
  %294 = vmatpush1.bf16.msra.mxu0 0
  %295 = vmatprep.subr.bf16.mxu0 0
  %296 = vmatpush1.bf16.msra.mxu0 0
  %297 = vmatprep.subr.bf16.mxu0 0
  %298 = vmatpush1.bf16.msra.mxu0 0
  %299 = vmatprep.subr.bf16.mxu0 0
  %300 = vmatpush1.bf16.msra.mxu0 0
  %301 = vmatprep.subr.bf16.mxu0 0
  %302 = vmatpush1.bf16.msra.mxu0 0
  %303 = vmatprep.subr.bf16.mxu0 0
  %304 = vmatpush1.bf16.msra.mxu0 0
  %305 = vmatprep.subr.bf16.mxu0 0
  %306 = vmatpush1.bf16.msra.mxu0 0
  %307 = vmatprep.subr.bf16.mxu0 0
  %308 = vmatpush1.bf16.msra.mxu0 0
  %309 = vmatprep.subr.bf16.mxu0 0
  %310 = vmatpush1.bf16.msra.mxu0 0
  %311 = vmatprep.subr.bf16.mxu0 0
  %312 = vmatpush1.bf16.msra.mxu0 0
  %313 = vmatprep.mubr.bf16.mxu0 0
  %314 = vmatmul.mubr.bf16.gmra.mrb[0].mxu0 %v270
  %v315 = vpop.f32.mrb[0].mxu0
  %v316 = vadd.f32 %v192, %v315
  %v317 = vpop.f32.mrb[0].mxu0
  %v318 = vadd.f32 %v196, %v317
  %v319 = vpop.f32.mrb[0].mxu0
  %v320 = vadd.f32 %v192, %v319
  %v321 = vpop.f32.mrb[0].mxu0
  %v322 = vadd.f32 %v196, %v321
  %323 = vmatprep.mubr.bf16.mxu0 0
  %324 = vmatmul.mubr.bf16.gmra.mrb[0].mxu0 %v273
  %v325 = vpop.f32.mrb[0].mxu0
  %v326 = vadd.f32 %v192, %v325
  %v327 = vpop.f32.mrb[0].mxu0
  %v328 = vadd.f32 %v196, %v327
  %v329 = vpop.f32.mrb[0].mxu0
  %v330 = vadd.f32 %v192, %v329
  %v331 = vpop.f32.mrb[0].mxu0
  %v332 = vadd.f32 %v196, %v331
  %333 = vmatprep.mubr.bf16.mxu0 0
  %334 = vmatmul.mubr.bf16.gmra.mrb[0].mxu0 %v276
  %v335 = vpop.f32.mrb[0].mxu0
  %v336 = vadd.f32 %v192, %v335
  %v337 = vpop.f32.mrb[0].mxu0
  %v338 = vadd.f32 %v196, %v337
  %v339 = vpop.f32.mrb[0].mxu0
  %v340 = vadd.f32 %v192, %v339
  %v341 = vpop.f32.mrb[0].mxu0
  %v342 = vadd.f32 %v196, %v341
  %343 = vmatprep.mubr.bf16.mxu0 0
  %344 = vmatmul.mubr.bf16.gmra.mrb[0].mxu0 %v279
  %v345 = vpop.f32.mrb[0].mxu0
  %v346 = vadd.f32 %v192, %v345
  %v347 = vpop.f32.mrb[0].mxu0
  %v348 = vadd.f32 %v196, %v347
  %v349 = vpop.f32.mrb[0].mxu0
  %v350 = vadd.f32 %v192, %v349
  %v351 = vpop.f32.mrb[0].mxu0
  %v352 = vadd.f32 %v196, %v351
  %353 = vdwg.mxu0
  %354 = vmatprep.subr.bf16.mxu0 0
  %355 = vmatpush1.bf16.msra.mxu0 %v246
  %356 = vmatprep.subr.bf16.mxu0 0
  %357 = vmatpush1.bf16.msra.mxu0 %v249
  %358 = vmatprep.subr.bf16.mxu0 0
  %359 = vmatpush1.bf16.msra.mxu0 %v252
  %360 = vmatprep.subr.bf16.mxu0 0
  %361 = vmatpush1.bf16.msra.mxu0 %v255
  %362 = vmatprep.subr.bf16.mxu0 0
  %363 = vmatpush1.bf16.msra.mxu0 0
  %364 = vmatprep.subr.bf16.mxu0 0
  %365 = vmatpush1.bf16.msra.mxu0 0
  %366 = vmatprep.subr.bf16.mxu0 0
  %367 = vmatpush1.bf16.msra.mxu0 0
  %368 = vmatprep.subr.bf16.mxu0 0
  %369 = vmatpush1.bf16.msra.mxu0 0
  %370 = vmatprep.subr.bf16.mxu0 0
  %371 = vmatpush1.bf16.msra.mxu0 0
  %372 = vmatprep.subr.bf16.mxu0 0
  %373 = vmatpush1.bf16.msra.mxu0 0
  %374 = vmatprep.subr.bf16.mxu0 0
  %375 = vmatpush1.bf16.msra.mxu0 0
  %376 = vmatprep.subr.bf16.mxu0 0
  %377 = vmatpush1.bf16.msra.mxu0 0
  %378 = vmatprep.subr.bf16.mxu0 0
  %379 = vmatpush1.bf16.msra.mxu0 0
  %380 = vmatprep.subr.bf16.mxu0 0
  %381 = vmatpush1.bf16.msra.mxu0 0
  %382 = vmatprep.subr.bf16.mxu0 0
  %383 = vmatpush1.bf16.msra.mxu0 0
  %384 = vmatprep.subr.bf16.mxu0 0
  %385 = vmatpush1.bf16.msra.mxu0 0
  %386 = vmatprep.mubr.bf16.mxu0 0
  %387 = vmatmul.mubr.bf16.gmra.mrb[0].mxu0 %v270
  %v388 = vpop.f32.mrb[0].mxu0
  %v389 = vadd.f32 %v200, %v388
  %v390 = vpop.f32.mrb[0].mxu0
  %v391 = vpop.f32.mrb[0].mxu0
  %v392 = vadd.f32 %v200, %v391
  %v393 = vpop.f32.mrb[0].mxu0
  %394 = vmatprep.mubr.bf16.mxu0 0
  %395 = vmatmul.mubr.bf16.gmra.mrb[0].mxu0 %v273
  %v396 = vpop.f32.mrb[0].mxu0
  %v397 = vadd.f32 %v200, %v396
  %v398 = vpop.f32.mrb[0].mxu0
  %v399 = vpop.f32.mrb[0].mxu0
  %v400 = vadd.f32 %v200, %v399
  %v401 = vpop.f32.mrb[0].mxu0
  %402 = vmatprep.mubr.bf16.mxu0 0
  %403 = vmatmul.mubr.bf16.gmra.mrb[0].mxu0 %v276
  %v404 = vpop.f32.mrb[0].mxu0
  %v405 = vadd.f32 %v200, %v404
  %v406 = vpop.f32.mrb[0].mxu0
  %v407 = vpop.f32.mrb[0].mxu0
  %v408 = vadd.f32 %v200, %v407
  %v409 = vpop.f32.mrb[0].mxu0
  %410 = vmatprep.mubr.bf16.mxu0 0
  %411 = vmatmul.mubr.bf16.gmra.mrb[0].mxu0 %v279
  %v412 = vpop.f32.mrb[0].mxu0
  %v413 = vadd.f32 %v200, %v412
  %v414 = vpop.f32.mrb[0].mxu0
  %v415 = vpop.f32.mrb[0].mxu0
  %v416 = vadd.f32 %v200, %v415
  %v417 = vpop.f32.mrb[0].mxu0
  %418 = vdwg.mxu0
  %419 = vst [vmem:[#allocation2] sm:$0xff] %v316
  %420 = vst [vmem:[#allocation2 + $0x8] sm:$0xff] %v318
  %421 = vst [vmem:[#allocation2 + $0x10] sm:$0xff] %v389
  %422 = vst [vmem:[#allocation2 + $0x18] sm:$0xff] %v320
  %423 = vst [vmem:[#allocation2 + $0x20] sm:$0xff] %v322
  %424 = vst [vmem:[#allocation2 + $0x28] sm:$0xff] %v392
  %425 = vst [vmem:[#allocation2 + $0x30] sm:$0xff] %v326
  %426 = vst [vmem:[#allocation2 + $0x38] sm:$0xff] %v328
  %427 = vst [vmem:[#allocation2 + $0x40] sm:$0xff] %v397
  %428 = vst [vmem:[#allocation2 + $0x48] sm:$0xff] %v330
  %429 = vst [vmem:[#allocation2 + $0x50] sm:$0xff] %v332
  %430 = vst [vmem:[#allocation2 + $0x58] sm:$0xff] %v400
  %431 = vst [vmem:[#allocation2 + $0x60] sm:$0xff] %v336
  %432 = vst [vmem:[#allocation2 + $0x68] sm:$0xff] %v338
  %433 = vst [vmem:[#allocation2 + $0x70] sm:$0xff] %v405
  %434 = vst [vmem:[#allocation2 + $0x78] sm:$0xff] %v340
  %435 = vst [vmem:[#allocation2 + $0x80] sm:$0xff] %v342
  %436 = vst [vmem:[#allocation2 + $0x88] sm:$0xff] %v408
  %437 = vst [vmem:[#allocation2 + $0x90] sm:$0xff] %v346
  %438 = vst [vmem:[#allocation2 + $0x98] sm:$0xff] %v348
  %439 = vst [vmem:[#allocation2 + $0xa0] sm:$0xff] %v413
  %440 = vst [vmem:[#allocation2 + $0xa8] sm:$0xff] %v350
  %441 = vst [vmem:[#allocation2 + $0xb0] sm:$0xff] %v352
  %442 = vst [vmem:[#allocation2 + $0xb8] sm:$0xff] %v416
  %v443 = vld [vmem:[%s6] sm:$0x7]
  %v445 = vlaneseq
  %v446 = vshrl.u32 %v445, 7
  %v447 = vsub.s32 0, %v446
  %v448 = vrot.slane %v443, %v447
  %v449 = vlaneseq
  %v450 = vshrl.u32 %v449, 7
  %v451 = vsub.s32 1, %v450
  %v452 = vrot.slane %v443, %v451
  %v453 = vlaneseq
  %v454 = vshrl.u32 %v453, 7
  %v455 = vsub.s32 2, %v454
  %v456 = vrot.slane %v443, %v455
  %v460 = vld [vmem:[%s5] sm:$0xff]
  %v461 = vld [vmem:[%s5 + $0x8] sm:$0xf]
  %v462 = vld [vmem:[%s5 + $0xc] sm:$0xff]
  %v463 = vld [vmem:[%s5 + $0x14] sm:$0xf]
  %v464 = vld [vmem:[%s5 + $0x18] sm:$0xff]
  %v465 = vld [vmem:[%s5 + $0x20] sm:$0xf]
  %v466 = vld [vmem:[%s5 + $0x24] sm:$0xff]
  %v467 = vld [vmem:[%s5 + $0x2c] sm:$0xf]
  %v468 = vld [vmem:[%s5 + $0x30] sm:$0xff]
  %v469 = vld [vmem:[%s5 + $0x38] sm:$0xf]
  %v470 = vld [vmem:[%s5 + $0x3c] sm:$0xff]
  %v471 = vld [vmem:[%s5 + $0x44] sm:$0xf]
  %v472 = vld [vmem:[%s5 + $0x48] sm:$0xff]
  %v473 = vld [vmem:[%s5 + $0x50] sm:$0xf]
  %v474 = vld [vmem:[%s5 + $0x54] sm:$0xff]
  %v475 = vld [vmem:[%s5 + $0x5c] sm:$0xf]
  %v476 = vld [vmem:[%s5 + $0x60] sm:$0xff]
  %v477 = vld [vmem:[%s5 + $0x68] sm:$0xf]
  %v478 = vld [vmem:[%s5 + $0x6c] sm:$0xff]
  %v479 = vld [vmem:[%s5 + $0x74] sm:$0xf]
  %v480 = vld [vmem:[%s5 + $0x78] sm:$0xff]
  %v481 = vld [vmem:[%s5 + $0x80] sm:$0xf]
  %v482 = vld [vmem:[%s5 + $0x84] sm:$0xff]
  %v483 = vld [vmem:[%s5 + $0x8c] sm:$0xf]
  %v484 = vld [vmem:[%s5 + $0x90] sm:$0xff]
  %v485 = vld [vmem:[%s5 + $0x98] sm:$0xf]
  %v486 = vld [vmem:[%s5 + $0x9c] sm:$0xff]
  %v487 = vld [vmem:[%s5 + $0xa4] sm:$0xf]
  %v488 = vld [vmem:[%s5 + $0xa8] sm:$0xff]
  %v489 = vld [vmem:[%s5 + $0xb0] sm:$0xf]
  %v490 = vld [vmem:[%s5 + $0xb4] sm:$0xff]
  %v491 = vld [vmem:[%s5 + $0xbc] sm:$0xf]
  %v492 = vld [vmem:[#allocation4] sm:$0xff]
  %v493 = vld [vmem:[#allocation2] sm:$0xff]
  %v494 = vld [vmem:[#allocation2 + $0x8] sm:$0xff]
  %v495 = vld [vmem:[#allocation2 + $0x10] sm:$0xff]
  %v496 = vpack.c.bf16 %v492, %v492
  %v529 = vunpack.c.l.b16 %v460
  %v530 = vunpack.c.h.b16 %v460
  %v531 = vunpack.c.l.b16 %v461
  %v532 = vunpack.c.l.b16 %v462
  %v533 = vunpack.c.h.b16 %v462
  %v534 = vunpack.c.l.b16 %v463
  %v535 = vunpack.c.l.b16 %v464
  %v536 = vunpack.c.h.b16 %v464
  %v537 = vunpack.c.l.b16 %v465
  %v538 = vunpack.c.l.b16 %v466
  %v539 = vunpack.c.h.b16 %v466
  %v540 = vunpack.c.l.b16 %v467
  %v541 = vunpack.c.l.b16 %v468
  %v542 = vunpack.c.h.b16 %v468
  %v543 = vunpack.c.l.b16 %v469
  %v544 = vunpack.c.l.b16 %v470
  %v545 = vunpack.c.h.b16 %v470
  %v546 = vunpack.c.l.b16 %v471
  %v547 = vunpack.c.l.b16 %v472
  %v548 = vunpack.c.h.b16 %v472
  %v549 = vunpack.c.l.b16 %v473
  %v550 = vunpack.c.l.b16 %v474
  %v551 = vunpack.c.h.b16 %v474
  %v552 = vunpack.c.l.b16 %v475
  %v553 = vunpack.c.l.b16 %v476
  %v554 = vunpack.c.h.b16 %v476
  %v555 = vunpack.c.l.b16 %v477
  %v556 = vunpack.c.l.b16 %v478
  %v557 = vunpack.c.h.b16 %v478
  %v558 = vunpack.c.l.b16 %v479
  %v559 = vunpack.c.l.b16 %v480
  %v560 = vunpack.c.h.b16 %v480
  %v561 = vunpack.c.l.b16 %v481
  %v562 = vunpack.c.l.b16 %v482
  %v563 = vunpack.c.h.b16 %v482
  %v564 = vunpack.c.l.b16 %v483
  %v565 = vunpack.c.l.b16 %v484
  %v566 = vunpack.c.h.b16 %v484
  %v567 = vunpack.c.l.b16 %v485
  %v568 = vunpack.c.l.b16 %v486
  %v569 = vunpack.c.h.b16 %v486
  %v570 = vunpack.c.l.b16 %v487
  %v571 = vunpack.c.l.b16 %v488
  %v572 = vunpack.c.h.b16 %v488
  %v573 = vunpack.c.l.b16 %v489
  %v574 = vunpack.c.l.b16 %v490
  %v575 = vunpack.c.h.b16 %v490
  %v576 = vunpack.c.l.b16 %v491
  %v577 = vpack.c.b16 %v532, %v529
  %v578 = vpack.c.b16 %v533, %v530
  %v579 = vpack.c.b16 %v534, %v531
  %v580 = vpack.c.b16 %v538, %v535
  %v581 = vpack.c.b16 %v539, %v536
  %v582 = vpack.c.b16 %v540, %v537
  %v583 = vpack.c.b16 %v544, %v541
  %v584 = vpack.c.b16 %v545, %v542
  %v585 = vpack.c.b16 %v546, %v543
  %v586 = vpack.c.b16 %v550, %v547
  %v587 = vpack.c.b16 %v551, %v548
  %v588 = vpack.c.b16 %v552, %v549
  %v589 = vpack.c.b16 %v556, %v553
  %v590 = vpack.c.b16 %v557, %v554
  %v591 = vpack.c.b16 %v558, %v555
  %v592 = vpack.c.b16 %v562, %v559
  %v593 = vpack.c.b16 %v563, %v560
  %v594 = vpack.c.b16 %v564, %v561
  %v595 = vpack.c.b16 %v568, %v565
  %v596 = vpack.c.b16 %v569, %v566
  %v597 = vpack.c.b16 %v570, %v567
  %v598 = vpack.c.b16 %v574, %v571
  %v599 = vpack.c.b16 %v575, %v572
  %v600 = vpack.c.b16 %v576, %v573
  %625 = vmatprep.subr.bf16.mxu0 %v578
  %626 = vmatpush1.bf16.msra.mxu0 %v577
  %627 = vmatprep.subr.bf16.mxu0 %v581
  %628 = vmatpush1.bf16.msra.mxu0 %v580
  %629 = vmatprep.subr.bf16.mxu0 %v584
  %630 = vmatpush1.bf16.msra.mxu0 %v583
  %631 = vmatprep.subr.bf16.mxu0 %v587
  %632 = vmatpush1.bf16.msra.mxu0 %v586
  %633 = vmatprep.subr.bf16.mxu0 %v590
  %634 = vmatpush1.bf16.msra.mxu0 %v589
  %635 = vmatprep.subr.bf16.mxu0 %v593
  %636 = vmatpush1.bf16.msra.mxu0 %v592
  %637 = vmatprep.subr.bf16.mxu0 %v596
  %638 = vmatpush1.bf16.msra.mxu0 %v595
  %639 = vmatprep.subr.bf16.mxu0 %v599
  %640 = vmatpush1.bf16.msra.mxu0 %v598
  %641 = vmatprep.subr.bf16.mxu0 0
  %642 = vmatpush1.bf16.msra.mxu0 0
  %643 = vmatprep.subr.bf16.mxu0 0
  %644 = vmatpush1.bf16.msra.mxu0 0
  %645 = vmatprep.subr.bf16.mxu0 0
  %646 = vmatpush1.bf16.msra.mxu0 0
  %647 = vmatprep.subr.bf16.mxu0 0
  %648 = vmatpush1.bf16.msra.mxu0 0
  %649 = vmatprep.subr.bf16.mxu0 0
  %650 = vmatpush1.bf16.msra.mxu0 0
  %651 = vmatprep.subr.bf16.mxu0 0
  %652 = vmatpush1.bf16.msra.mxu0 0
  %653 = vmatprep.subr.bf16.mxu0 0
  %654 = vmatpush1.bf16.msra.mxu0 0
  %655 = vmatprep.subr.bf16.mxu0 0
  %656 = vmatpush1.bf16.msra.mxu0 0
  %657 = vmatprep.mubr.bf16.mxu0 0
  %658 = vmatmul.mubr.bf16.gmra.mrb[0].mxu0 %v496
  %v659 = vpop.f32.mrb[0].mxu0
  %v660 = vadd.f32 %v448, %v659
  %v661 = vpop.f32.mrb[0].mxu0
  %v662 = vadd.f32 %v452, %v661
  %v663 = vpop.f32.mrb[0].mxu0
  %v664 = vpop.f32.mrb[0].mxu0
  %665 = vdwg.mxu0
  %666 = vmatprep.subr.bf16.mxu0 0
  %667 = vmatpush1.bf16.msra.mxu0 %v579
  %668 = vmatprep.subr.bf16.mxu0 0
  %669 = vmatpush1.bf16.msra.mxu0 %v582
  %670 = vmatprep.subr.bf16.mxu0 0
  %671 = vmatpush1.bf16.msra.mxu0 %v585
  %672 = vmatprep.subr.bf16.mxu0 0
  %673 = vmatpush1.bf16.msra.mxu0 %v588
  %674 = vmatprep.subr.bf16.mxu0 0
  %675 = vmatpush1.bf16.msra.mxu0 %v591
  %676 = vmatprep.subr.bf16.mxu0 0
  %677 = vmatpush1.bf16.msra.mxu0 %v594
  %678 = vmatprep.subr.bf16.mxu0 0
  %679 = vmatpush1.bf16.msra.mxu0 %v597
  %680 = vmatprep.subr.bf16.mxu0 0
  %681 = vmatpush1.bf16.msra.mxu0 %v600
  %682 = vmatprep.subr.bf16.mxu0 0
  %683 = vmatpush1.bf16.msra.mxu0 0
  %684 = vmatprep.subr.bf16.mxu0 0
  %685 = vmatpush1.bf16.msra.mxu0 0
  %686 = vmatprep.subr.bf16.mxu0 0
  %687 = vmatpush1.bf16.msra.mxu0 0
  %688 = vmatprep.subr.bf16.mxu0 0
  %689 = vmatpush1.bf16.msra.mxu0 0
  %690 = vmatprep.subr.bf16.mxu0 0
  %691 = vmatpush1.bf16.msra.mxu0 0
  %692 = vmatprep.subr.bf16.mxu0 0
  %693 = vmatpush1.bf16.msra.mxu0 0
  %694 = vmatprep.subr.bf16.mxu0 0
  %695 = vmatpush1.bf16.msra.mxu0 0
  %696 = vmatprep.subr.bf16.mxu0 0
  %697 = vmatpush1.bf16.msra.mxu0 0
  %698 = vmatprep.mubr.bf16.mxu0 0
  %699 = vmatmul.mubr.bf16.gmra.mrb[0].mxu0 %v496
  %v700 = vpop.f32.mrb[0].mxu0
  %v701 = vadd.f32 %v456, %v700
  %v702 = vpop.f32.mrb[0].mxu0
  %v703 = vpop.f32.mrb[0].mxu0
  %v704 = vpop.f32.mrb[0].mxu0
  %705 = vdwg.mxu0
  %v706 = vadd.f32 %v493, %v660
  %v707 = vmul.f32 %v706, 0.5
  %v708 = vtanh.pop %v707
  %v709 = vadd.f32 %v708, 1.0
  %v710 = vmul.f32 %v709, 0.5
  %v711 = vadd.f32 %v494, %v662
  %v712 = vmul.f32 %v711, 0.5
  %v713 = vtanh.pop %v712
  %v714 = vadd.f32 %v713, 1.0
  %v715 = vmul.f32 %v714, 0.5
  %v716 = vmul.f32 %v710, %v701
  %v717 = vadd.f32 %v495, %v716
  %v718 = vtanh.pop %v717
  %v719 = vsub.f32 1.0, %v715
  %v720 = vmul.f32 %v719, %v718
  %v721 = vmul.f32 %v715, %v492
  %v722 = vadd.f32 %v720, %v721
  %723 = vst [vmem:[#allocation3] sm:$0xff] %v722
  %v724 = vld [vmem:[#allocation2 + $0x18] sm:$0xff]
  %v725 = vld [vmem:[#allocation2 + $0x20] sm:$0xff]
  %v726 = vld [vmem:[#allocation2 + $0x28] sm:$0xff]
  %v727 = vpack.c.bf16 %v722, %v722
  %728 = vmatprep.subr.bf16.mxu0 %v578
  %729 = vmatpush1.bf16.msra.mxu0 %v577
  %730 = vmatprep.subr.bf16.mxu0 %v581
  %731 = vmatpush1.bf16.msra.mxu0 %v580
  %732 = vmatprep.subr.bf16.mxu0 %v584
  %733 = vmatpush1.bf16.msra.mxu0 %v583
  %734 = vmatprep.subr.bf16.mxu0 %v587
  %735 = vmatpush1.bf16.msra.mxu0 %v586
  %736 = vmatprep.subr.bf16.mxu0 %v590
  %737 = vmatpush1.bf16.msra.mxu0 %v589
  %738 = vmatprep.subr.bf16.mxu0 %v593
  %739 = vmatpush1.bf16.msra.mxu0 %v592
  %740 = vmatprep.subr.bf16.mxu0 %v596
  %741 = vmatpush1.bf16.msra.mxu0 %v595
  %742 = vmatprep.subr.bf16.mxu0 %v599
  %743 = vmatpush1.bf16.msra.mxu0 %v598
  %744 = vmatprep.subr.bf16.mxu0 0
  %745 = vmatpush1.bf16.msra.mxu0 0
  %746 = vmatprep.subr.bf16.mxu0 0
  %747 = vmatpush1.bf16.msra.mxu0 0
  %748 = vmatprep.subr.bf16.mxu0 0
  %749 = vmatpush1.bf16.msra.mxu0 0
  %750 = vmatprep.subr.bf16.mxu0 0
  %751 = vmatpush1.bf16.msra.mxu0 0
  %752 = vmatprep.subr.bf16.mxu0 0
  %753 = vmatpush1.bf16.msra.mxu0 0
  %754 = vmatprep.subr.bf16.mxu0 0
  %755 = vmatpush1.bf16.msra.mxu0 0
  %756 = vmatprep.subr.bf16.mxu0 0
  %757 = vmatpush1.bf16.msra.mxu0 0
  %758 = vmatprep.subr.bf16.mxu0 0
  %759 = vmatpush1.bf16.msra.mxu0 0
  %760 = vmatprep.mubr.bf16.mxu0 0
  %761 = vmatmul.mubr.bf16.gmra.mrb[0].mxu0 %v727
  %v762 = vpop.f32.mrb[0].mxu0
  %v763 = vadd.f32 %v448, %v762
  %v764 = vpop.f32.mrb[0].mxu0
  %v765 = vadd.f32 %v452, %v764
  %v766 = vpop.f32.mrb[0].mxu0
  %v767 = vpop.f32.mrb[0].mxu0
  %768 = vdwg.mxu0
  %769 = vmatprep.subr.bf16.mxu0 0
  %770 = vmatpush1.bf16.msra.mxu0 %v579
  %771 = vmatprep.subr.bf16.mxu0 0
  %772 = vmatpush1.bf16.msra.mxu0 %v582
  %773 = vmatprep.subr.bf16.mxu0 0
  %774 = vmatpush1.bf16.msra.mxu0 %v585
  %775 = vmatprep.subr.bf16.mxu0 0
  %776 = vmatpush1.bf16.msra.mxu0 %v588
  %777 = vmatprep.subr.bf16.mxu0 0
  %778 = vmatpush1.bf16.msra.mxu0 %v591
  %779 = vmatprep.subr.bf16.mxu0 0
  %780 = vmatpush1.bf16.msra.mxu0 %v594
  %781 = vmatprep.subr.bf16.mxu0 0
  %782 = vmatpush1.bf16.msra.mxu0 %v597
  %783 = vmatprep.subr.bf16.mxu0 0
  %784 = vmatpush1.bf16.msra.mxu0 %v600
  %785 = vmatprep.subr.bf16.mxu0 0
  %786 = vmatpush1.bf16.msra.mxu0 0
  %787 = vmatprep.subr.bf16.mxu0 0
  %788 = vmatpush1.bf16.msra.mxu0 0
  %789 = vmatprep.subr.bf16.mxu0 0
  %790 = vmatpush1.bf16.msra.mxu0 0
  %791 = vmatprep.subr.bf16.mxu0 0
  %792 = vmatpush1.bf16.msra.mxu0 0
  %793 = vmatprep.subr.bf16.mxu0 0
  %794 = vmatpush1.bf16.msra.mxu0 0
  %795 = vmatprep.subr.bf16.mxu0 0
  %796 = vmatpush1.bf16.msra.mxu0 0
  %797 = vmatprep.subr.bf16.mxu0 0
  %798 = vmatpush1.bf16.msra.mxu0 0
  %799 = vmatprep.subr.bf16.mxu0 0
  %800 = vmatpush1.bf16.msra.mxu0 0
  %801 = vmatprep.mubr.bf16.mxu0 0
  %802 = vmatmul.mubr.bf16.gmra.mrb[0].mxu0 %v727
  %v803 = vpop.f32.mrb[0].mxu0
  %v804 = vadd.f32 %v456, %v803
  %v805 = vpop.f32.mrb[0].mxu0
  %v806 = vpop.f32.mrb[0].mxu0
  %v807 = vpop.f32.mrb[0].mxu0
  %808 = vdwg.mxu0
  %v809 = vadd.f32 %v724, %v763
  %v810 = vmul.f32 %v809, 0.5
  %v811 = vtanh.pop %v810
  %v812 = vadd.f32 %v811, 1.0
  %v813 = vmul.f32 %v812, 0.5
  %v814 = vadd.f32 %v725, %v765
  %v815 = vmul.f32 %v814, 0.5
  %v816 = vtanh.pop %v815
  %v817 = vadd.f32 %v816, 1.0
  %v818 = vmul.f32 %v817, 0.5
  %v819 = vmul.f32 %v813, %v804
  %v820 = vadd.f32 %v726, %v819
  %v821 = vtanh.pop %v820
  %v822 = vsub.f32 1.0, %v818
  %v823 = vmul.f32 %v822, %v821
  %v824 = vmul.f32 %v818, %v722
  %v825 = vadd.f32 %v823, %v824
  %826 = vst [vmem:[#allocation3 + $0x8] sm:$0xff] %v825
  %v827 = vld [vmem:[#allocation2 + $0x30] sm:$0xff]
  %v828 = vld [vmem:[#allocation2 + $0x38] sm:$0xff]
  %v829 = vld [vmem:[#allocation2 + $0x40] sm:$0xff]
  %v830 = vpack.c.bf16 %v825, %v825
  %831 = vmatprep.subr.bf16.mxu0 %v578
  %832 = vmatpush1.bf16.msra.mxu0 %v577
  %833 = vmatprep.subr.bf16.mxu0 %v581
  %834 = vmatpush1.bf16.msra.mxu0 %v580
  %835 = vmatprep.subr.bf16.mxu0 %v584
  %836 = vmatpush1.bf16.msra.mxu0 %v583
  %837 = vmatprep.subr.bf16.mxu0 %v587
  %838 = vmatpush1.bf16.msra.mxu0 %v586
  %839 = vmatprep.subr.bf16.mxu0 %v590
  %840 = vmatpush1.bf16.msra.mxu0 %v589
  %841 = vmatprep.subr.bf16.mxu0 %v593
  %842 = vmatpush1.bf16.msra.mxu0 %v592
  %843 = vmatprep.subr.bf16.mxu0 %v596
  %844 = vmatpush1.bf16.msra.mxu0 %v595
  %845 = vmatprep.subr.bf16.mxu0 %v599
  %846 = vmatpush1.bf16.msra.mxu0 %v598
  %847 = vmatprep.subr.bf16.mxu0 0
  %848 = vmatpush1.bf16.msra.mxu0 0
  %849 = vmatprep.subr.bf16.mxu0 0
  %850 = vmatpush1.bf16.msra.mxu0 0
  %851 = vmatprep.subr.bf16.mxu0 0
  %852 = vmatpush1.bf16.msra.mxu0 0
  %853 = vmatprep.subr.bf16.mxu0 0
  %854 = vmatpush1.bf16.msra.mxu0 0
  %855 = vmatprep.subr.bf16.mxu0 0
  %856 = vmatpush1.bf16.msra.mxu0 0
  %857 = vmatprep.subr.bf16.mxu0 0
  %858 = vmatpush1.bf16.msra.mxu0 0
  %859 = vmatprep.subr.bf16.mxu0 0
  %860 = vmatpush1.bf16.msra.mxu0 0
  %861 = vmatprep.subr.bf16.mxu0 0
  %862 = vmatpush1.bf16.msra.mxu0 0
  %863 = vmatprep.mubr.bf16.mxu0 0
  %864 = vmatmul.mubr.bf16.gmra.mrb[0].mxu0 %v830
  %v865 = vpop.f32.mrb[0].mxu0
  %v866 = vadd.f32 %v448, %v865
  %v867 = vpop.f32.mrb[0].mxu0
  %v868 = vadd.f32 %v452, %v867
  %v869 = vpop.f32.mrb[0].mxu0
  %v870 = vpop.f32.mrb[0].mxu0
  %871 = vdwg.mxu0
  %872 = vmatprep.subr.bf16.mxu0 0
  %873 = vmatpush1.bf16.msra.mxu0 %v579
  %874 = vmatprep.subr.bf16.mxu0 0
  %875 = vmatpush1.bf16.msra.mxu0 %v582
  %876 = vmatprep.subr.bf16.mxu0 0
  %877 = vmatpush1.bf16.msra.mxu0 %v585
  %878 = vmatprep.subr.bf16.mxu0 0
  %879 = vmatpush1.bf16.msra.mxu0 %v588
  %880 = vmatprep.subr.bf16.mxu0 0
  %881 = vmatpush1.bf16.msra.mxu0 %v591
  %882 = vmatprep.subr.bf16.mxu0 0
  %883 = vmatpush1.bf16.msra.mxu0 %v594
  %884 = vmatprep.subr.bf16.mxu0 0
  %885 = vmatpush1.bf16.msra.mxu0 %v597
  %886 = vmatprep.subr.bf16.mxu0 0
  %887 = vmatpush1.bf16.msra.mxu0 %v600
  %888 = vmatprep.subr.bf16.mxu0 0
  %889 = vmatpush1.bf16.msra.mxu0 0
  %890 = vmatprep.subr.bf16.mxu0 0
  %891 = vmatpush1.bf16.msra.mxu0 0
  %892 = vmatprep.subr.bf16.mxu0 0
  %893 = vmatpush1.bf16.msra.mxu0 0
  %894 = vmatprep.subr.bf16.mxu0 0
  %895 = vmatpush1.bf16.msra.mxu0 0
  %896 = vmatprep.subr.bf16.mxu0 0
  %897 = vmatpush1.bf16.msra.mxu0 0
  %898 = vmatprep.subr.bf16.mxu0 0
  %899 = vmatpush1.bf16.msra.mxu0 0
  %900 = vmatprep.subr.bf16.mxu0 0
  %901 = vmatpush1.bf16.msra.mxu0 0
  %902 = vmatprep.subr.bf16.mxu0 0
  %903 = vmatpush1.bf16.msra.mxu0 0
  %904 = vmatprep.mubr.bf16.mxu0 0
  %905 = vmatmul.mubr.bf16.gmra.mrb[0].mxu0 %v830
  %v906 = vpop.f32.mrb[0].mxu0
  %v907 = vadd.f32 %v456, %v906
  %v908 = vpop.f32.mrb[0].mxu0
  %v909 = vpop.f32.mrb[0].mxu0
  %v910 = vpop.f32.mrb[0].mxu0
  %911 = vdwg.mxu0
  %v912 = vadd.f32 %v827, %v866
  %v913 = vmul.f32 %v912, 0.5
  %v914 = vtanh.pop %v913
  %v915 = vadd.f32 %v914, 1.0
  %v916 = vmul.f32 %v915, 0.5
  %v917 = vadd.f32 %v828, %v868
  %v918 = vmul.f32 %v917, 0.5
  %v919 = vtanh.pop %v918
  %v920 = vadd.f32 %v919, 1.0
  %v921 = vmul.f32 %v920, 0.5
  %v922 = vmul.f32 %v916, %v907
  %v923 = vadd.f32 %v829, %v922
  %v924 = vtanh.pop %v923
  %v925 = vsub.f32 1.0, %v921
  %v926 = vmul.f32 %v925, %v924
  %v927 = vmul.f32 %v921, %v825
  %v928 = vadd.f32 %v926, %v927
  %929 = vst [vmem:[#allocation3 + $0x10] sm:$0xff] %v928
  %v930 = vld [vmem:[#allocation2 + $0x48] sm:$0xff]
  %v931 = vld [vmem:[#allocation2 + $0x50] sm:$0xff]
  %v932 = vld [vmem:[#allocation2 + $0x58] sm:$0xff]
  %v933 = vpack.c.bf16 %v928, %v928
  %934 = vmatprep.subr.bf16.mxu0 %v578
  %935 = vmatpush1.bf16.msra.mxu0 %v577
  %936 = vmatprep.subr.bf16.mxu0 %v581
  %937 = vmatpush1.bf16.msra.mxu0 %v580
  %938 = vmatprep.subr.bf16.mxu0 %v584
  %939 = vmatpush1.bf16.msra.mxu0 %v583
  %940 = vmatprep.subr.bf16.mxu0 %v587
  %941 = vmatpush1.bf16.msra.mxu0 %v586
  %942 = vmatprep.subr.bf16.mxu0 %v590
  %943 = vmatpush1.bf16.msra.mxu0 %v589
  %944 = vmatprep.subr.bf16.mxu0 %v593
  %945 = vmatpush1.bf16.msra.mxu0 %v592
  %946 = vmatprep.subr.bf16.mxu0 %v596
  %947 = vmatpush1.bf16.msra.mxu0 %v595
  %948 = vmatprep.subr.bf16.mxu0 %v599
  %949 = vmatpush1.bf16.msra.mxu0 %v598
  %950 = vmatprep.subr.bf16.mxu0 0
  %951 = vmatpush1.bf16.msra.mxu0 0
  %952 = vmatprep.subr.bf16.mxu0 0
  %953 = vmatpush1.bf16.msra.mxu0 0
  %954 = vmatprep.subr.bf16.mxu0 0
  %955 = vmatpush1.bf16.msra.mxu0 0
  %956 = vmatprep.subr.bf16.mxu0 0
  %957 = vmatpush1.bf16.msra.mxu0 0
  %958 = vmatprep.subr.bf16.mxu0 0
  %959 = vmatpush1.bf16.msra.mxu0 0
  %960 = vmatprep.subr.bf16.mxu0 0
  %961 = vmatpush1.bf16.msra.mxu0 0
  %962 = vmatprep.subr.bf16.mxu0 0
  %963 = vmatpush1.bf16.msra.mxu0 0
  %964 = vmatprep.subr.bf16.mxu0 0
  %965 = vmatpush1.bf16.msra.mxu0 0
  %966 = vmatprep.mubr.bf16.mxu0 0
  %967 = vmatmul.mubr.bf16.gmra.mrb[0].mxu0 %v933
  %v968 = vpop.f32.mrb[0].mxu0
  %v969 = vadd.f32 %v448, %v968
  %v970 = vpop.f32.mrb[0].mxu0
  %v971 = vadd.f32 %v452, %v970
  %v972 = vpop.f32.mrb[0].mxu0
  %v973 = vpop.f32.mrb[0].mxu0
  %974 = vdwg.mxu0
  %975 = vmatprep.subr.bf16.mxu0 0
  %976 = vmatpush1.bf16.msra.mxu0 %v579
  %977 = vmatprep.subr.bf16.mxu0 0
  %978 = vmatpush1.bf16.msra.mxu0 %v582
  %979 = vmatprep.subr.bf16.mxu0 0
  %980 = vmatpush1.bf16.msra.mxu0 %v585
  %981 = vmatprep.subr.bf16.mxu0 0
  %982 = vmatpush1.bf16.msra.mxu0 %v588
  %983 = vmatprep.subr.bf16.mxu0 0
  %984 = vmatpush1.bf16.msra.mxu0 %v591
  %985 = vmatprep.subr.bf16.mxu0 0
  %986 = vmatpush1.bf16.msra.mxu0 %v594
  %987 = vmatprep.subr.bf16.mxu0 0
  %988 = vmatpush1.bf16.msra.mxu0 %v597
  %989 = vmatprep.subr.bf16.mxu0 0
  %990 = vmatpush1.bf16.msra.mxu0 %v600
  %991 = vmatprep.subr.bf16.mxu0 0
  %992 = vmatpush1.bf16.msra.mxu0 0
  %993 = vmatprep.subr.bf16.mxu0 0
  %994 = vmatpush1.bf16.msra.mxu0 0
  %995 = vmatprep.subr.bf16.mxu0 0
  %996 = vmatpush1.bf16.msra.mxu0 0
  %997 = vmatprep.subr.bf16.mxu0 0
  %998 = vmatpush1.bf16.msra.mxu0 0
  %999 = vmatprep.subr.bf16.mxu0 0
  %1000 = vmatpush1.bf16.msra.mxu0 0
  %1001 = vmatprep.subr.bf16.mxu0 0
  %1002 = vmatpush1.bf16.msra.mxu0 0
  %1003 = vmatprep.subr.bf16.mxu0 0
  %1004 = vmatpush1.bf16.msra.mxu0 0
  %1005 = vmatprep.subr.bf16.mxu0 0
  %1006 = vmatpush1.bf16.msra.mxu0 0
  %1007 = vmatprep.mubr.bf16.mxu0 0
  %1008 = vmatmul.mubr.bf16.gmra.mrb[0].mxu0 %v933
  %v1009 = vpop.f32.mrb[0].mxu0
  %v1010 = vadd.f32 %v456, %v1009
  %v1011 = vpop.f32.mrb[0].mxu0
  %v1012 = vpop.f32.mrb[0].mxu0
  %v1013 = vpop.f32.mrb[0].mxu0
  %1014 = vdwg.mxu0
  %v1015 = vadd.f32 %v930, %v969
  %v1016 = vmul.f32 %v1015, 0.5
  %v1017 = vtanh.pop %v1016
  %v1018 = vadd.f32 %v1017, 1.0
  %v1019 = vmul.f32 %v1018, 0.5
  %v1020 = vadd.f32 %v931, %v971
  %v1021 = vmul.f32 %v1020, 0.5
  %v1022 = vtanh.pop %v1021
  %v1023 = vadd.f32 %v1022, 1.0
  %v1024 = vmul.f32 %v1023, 0.5
  %v1025 = vmul.f32 %v1019, %v1010
  %v1026 = vadd.f32 %v932, %v1025
  %v1027 = vtanh.pop %v1026
  %v1028 = vsub.f32 1.0, %v1024
  %v1029 = vmul.f32 %v1028, %v1027
  %v1030 = vmul.f32 %v1024, %v928
  %v1031 = vadd.f32 %v1029, %v1030
  %1032 = vst [vmem:[#allocation3 + $0x18] sm:$0xff] %v1031
  %v1033 = vld [vmem:[#allocation2 + $0x60] sm:$0xff]
  %v1034 = vld [vmem:[#allocation2 + $0x68] sm:$0xff]
  %v1035 = vld [vmem:[#allocation2 + $0x70] sm:$0xff]
  %v1036 = vpack.c.bf16 %v1031, %v1031
  %1037 = vmatprep.subr.bf16.mxu0 %v578
  %1038 = vmatpush1.bf16.msra.mxu0 %v577
  %1039 = vmatprep.subr.bf16.mxu0 %v581
  %1040 = vmatpush1.bf16.msra.mxu0 %v580
  %1041 = vmatprep.subr.bf16.mxu0 %v584
  %1042 = vmatpush1.bf16.msra.mxu0 %v583
  %1043 = vmatprep.subr.bf16.mxu0 %v587
  %1044 = vmatpush1.bf16.msra.mxu0 %v586
  %1045 = vmatprep.subr.bf16.mxu0 %v590
  %1046 = vmatpush1.bf16.msra.mxu0 %v589
  %1047 = vmatprep.subr.bf16.mxu0 %v593
  %1048 = vmatpush1.bf16.msra.mxu0 %v592
  %1049 = vmatprep.subr.bf16.mxu0 %v596
  %1050 = vmatpush1.bf16.msra.mxu0 %v595
  %1051 = vmatprep.subr.bf16.mxu0 %v599
  %1052 = vmatpush1.bf16.msra.mxu0 %v598
  %1053 = vmatprep.subr.bf16.mxu0 0
  %1054 = vmatpush1.bf16.msra.mxu0 0
  %1055 = vmatprep.subr.bf16.mxu0 0
  %1056 = vmatpush1.bf16.msra.mxu0 0
  %1057 = vmatprep.subr.bf16.mxu0 0
  %1058 = vmatpush1.bf16.msra.mxu0 0
  %1059 = vmatprep.subr.bf16.mxu0 0
  %1060 = vmatpush1.bf16.msra.mxu0 0
  %1061 = vmatprep.subr.bf16.mxu0 0
  %1062 = vmatpush1.bf16.msra.mxu0 0
  %1063 = vmatprep.subr.bf16.mxu0 0
  %1064 = vmatpush1.bf16.msra.mxu0 0
  %1065 = vmatprep.subr.bf16.mxu0 0
  %1066 = vmatpush1.bf16.msra.mxu0 0
  %1067 = vmatprep.subr.bf16.mxu0 0
  %1068 = vmatpush1.bf16.msra.mxu0 0
  %1069 = vmatprep.mubr.bf16.mxu0 0
  %1070 = vmatmul.mubr.bf16.gmra.mrb[0].mxu0 %v1036
  %v1071 = vpop.f32.mrb[0].mxu0
  %v1072 = vadd.f32 %v448, %v1071
  %v1073 = vpop.f32.mrb[0].mxu0
  %v1074 = vadd.f32 %v452, %v1073
  %v1075 = vpop.f32.mrb[0].mxu0
  %v1076 = vpop.f32.mrb[0].mxu0
  %1077 = vdwg.mxu0
  %1078 = vmatprep.subr.bf16.mxu0 0
  %1079 = vmatpush1.bf16.msra.mxu0 %v579
  %1080 = vmatprep.subr.bf16.mxu0 0
  %1081 = vmatpush1.bf16.msra.mxu0 %v582
  %1082 = vmatprep.subr.bf16.mxu0 0
  %1083 = vmatpush1.bf16.msra.mxu0 %v585
  %1084 = vmatprep.subr.bf16.mxu0 0
  %1085 = vmatpush1.bf16.msra.mxu0 %v588
  %1086 = vmatprep.subr.bf16.mxu0 0
  %1087 = vmatpush1.bf16.msra.mxu0 %v591
  %1088 = vmatprep.subr.bf16.mxu0 0
  %1089 = vmatpush1.bf16.msra.mxu0 %v594
  %1090 = vmatprep.subr.bf16.mxu0 0
  %1091 = vmatpush1.bf16.msra.mxu0 %v597
  %1092 = vmatprep.subr.bf16.mxu0 0
  %1093 = vmatpush1.bf16.msra.mxu0 %v600
  %1094 = vmatprep.subr.bf16.mxu0 0
  %1095 = vmatpush1.bf16.msra.mxu0 0
  %1096 = vmatprep.subr.bf16.mxu0 0
  %1097 = vmatpush1.bf16.msra.mxu0 0
  %1098 = vmatprep.subr.bf16.mxu0 0
  %1099 = vmatpush1.bf16.msra.mxu0 0
  %1100 = vmatprep.subr.bf16.mxu0 0
  %1101 = vmatpush1.bf16.msra.mxu0 0
  %1102 = vmatprep.subr.bf16.mxu0 0
  %1103 = vmatpush1.bf16.msra.mxu0 0
  %1104 = vmatprep.subr.bf16.mxu0 0
  %1105 = vmatpush1.bf16.msra.mxu0 0
  %1106 = vmatprep.subr.bf16.mxu0 0
  %1107 = vmatpush1.bf16.msra.mxu0 0
  %1108 = vmatprep.subr.bf16.mxu0 0
  %1109 = vmatpush1.bf16.msra.mxu0 0
  %1110 = vmatprep.mubr.bf16.mxu0 0
  %1111 = vmatmul.mubr.bf16.gmra.mrb[0].mxu0 %v1036
  %v1112 = vpop.f32.mrb[0].mxu0
  %v1113 = vadd.f32 %v456, %v1112
  %v1114 = vpop.f32.mrb[0].mxu0
  %v1115 = vpop.f32.mrb[0].mxu0
  %v1116 = vpop.f32.mrb[0].mxu0
  %1117 = vdwg.mxu0
  %v1118 = vadd.f32 %v1033, %v1072
  %v1119 = vmul.f32 %v1118, 0.5
  %v1120 = vtanh.pop %v1119
  %v1121 = vadd.f32 %v1120, 1.0
  %v1122 = vmul.f32 %v1121, 0.5
  %v1123 = vadd.f32 %v1034, %v1074
  %v1124 = vmul.f32 %v1123, 0.5
  %v1125 = vtanh.pop %v1124
  %v1126 = vadd.f32 %v1125, 1.0
  %v1127 = vmul.f32 %v1126, 0.5
  %v1128 = vmul.f32 %v1122, %v1113
  %v1129 = vadd.f32 %v1035, %v1128
  %v1130 = vtanh.pop %v1129
  %v1131 = vsub.f32 1.0, %v1127
  %v1132 = vmul.f32 %v1131, %v1130
  %v1133 = vmul.f32 %v1127, %v1031
  %v1134 = vadd.f32 %v1132, %v1133
  %1135 = vst [vmem:[#allocation3 + $0x20] sm:$0xff] %v1134
  %v1136 = vld [vmem:[#allocation2 + $0x78] sm:$0xff]
  %v1137 = vld [vmem:[#allocation2 + $0x80] sm:$0xff]
  %v1138 = vld [vmem:[#allocation2 + $0x88] sm:$0xff]
  %v1139 = vpack.c.bf16 %v1134, %v1134
  %1140 = vmatprep.subr.bf16.mxu0 %v578
  %1141 = vmatpush1.bf16.msra.mxu0 %v577
  %1142 = vmatprep.subr.bf16.mxu0 %v581
  %1143 = vmatpush1.bf16.msra.mxu0 %v580
  %1144 = vmatprep.subr.bf16.mxu0 %v584
  %1145 = vmatpush1.bf16.msra.mxu0 %v583
  %1146 = vmatprep.subr.bf16.mxu0 %v587
  %1147 = vmatpush1.bf16.msra.mxu0 %v586
  %1148 = vmatprep.subr.bf16.mxu0 %v590
  %1149 = vmatpush1.bf16.msra.mxu0 %v589
  %1150 = vmatprep.subr.bf16.mxu0 %v593
  %1151 = vmatpush1.bf16.msra.mxu0 %v592
  %1152 = vmatprep.subr.bf16.mxu0 %v596
  %1153 = vmatpush1.bf16.msra.mxu0 %v595
  %1154 = vmatprep.subr.bf16.mxu0 %v599
  %1155 = vmatpush1.bf16.msra.mxu0 %v598
  %1156 = vmatprep.subr.bf16.mxu0 0
  %1157 = vmatpush1.bf16.msra.mxu0 0
  %1158 = vmatprep.subr.bf16.mxu0 0
  %1159 = vmatpush1.bf16.msra.mxu0 0
  %1160 = vmatprep.subr.bf16.mxu0 0
  %1161 = vmatpush1.bf16.msra.mxu0 0
  %1162 = vmatprep.subr.bf16.mxu0 0
  %1163 = vmatpush1.bf16.msra.mxu0 0
  %1164 = vmatprep.subr.bf16.mxu0 0
  %1165 = vmatpush1.bf16.msra.mxu0 0
  %1166 = vmatprep.subr.bf16.mxu0 0
  %1167 = vmatpush1.bf16.msra.mxu0 0
  %1168 = vmatprep.subr.bf16.mxu0 0
  %1169 = vmatpush1.bf16.msra.mxu0 0
  %1170 = vmatprep.subr.bf16.mxu0 0
  %1171 = vmatpush1.bf16.msra.mxu0 0
  %1172 = vmatprep.mubr.bf16.mxu0 0
  %1173 = vmatmul.mubr.bf16.gmra.mrb[0].mxu0 %v1139
  %v1174 = vpop.f32.mrb[0].mxu0
  %v1175 = vadd.f32 %v448, %v1174
  %v1176 = vpop.f32.mrb[0].mxu0
  %v1177 = vadd.f32 %v452, %v1176
  %v1178 = vpop.f32.mrb[0].mxu0
  %v1179 = vpop.f32.mrb[0].mxu0
  %1180 = vdwg.mxu0
  %1181 = vmatprep.subr.bf16.mxu0 0
  %1182 = vmatpush1.bf16.msra.mxu0 %v579
  %1183 = vmatprep.subr.bf16.mxu0 0
  %1184 = vmatpush1.bf16.msra.mxu0 %v582
  %1185 = vmatprep.subr.bf16.mxu0 0
  %1186 = vmatpush1.bf16.msra.mxu0 %v585
  %1187 = vmatprep.subr.bf16.mxu0 0
  %1188 = vmatpush1.bf16.msra.mxu0 %v588
  %1189 = vmatprep.subr.bf16.mxu0 0
  %1190 = vmatpush1.bf16.msra.mxu0 %v591
  %1191 = vmatprep.subr.bf16.mxu0 0
  %1192 = vmatpush1.bf16.msra.mxu0 %v594
  %1193 = vmatprep.subr.bf16.mxu0 0
  %1194 = vmatpush1.bf16.msra.mxu0 %v597
  %1195 = vmatprep.subr.bf16.mxu0 0
  %1196 = vmatpush1.bf16.msra.mxu0 %v600
  %1197 = vmatprep.subr.bf16.mxu0 0
  %1198 = vmatpush1.bf16.msra.mxu0 0
  %1199 = vmatprep.subr.bf16.mxu0 0
  %1200 = vmatpush1.bf16.msra.mxu0 0
  %1201 = vmatprep.subr.bf16.mxu0 0
  %1202 = vmatpush1.bf16.msra.mxu0 0
  %1203 = vmatprep.subr.bf16.mxu0 0
  %1204 = vmatpush1.bf16.msra.mxu0 0
  %1205 = vmatprep.subr.bf16.mxu0 0
  %1206 = vmatpush1.bf16.msra.mxu0 0
  %1207 = vmatprep.subr.bf16.mxu0 0
  %1208 = vmatpush1.bf16.msra.mxu0 0
  %1209 = vmatprep.subr.bf16.mxu0 0
  %1210 = vmatpush1.bf16.msra.mxu0 0
  %1211 = vmatprep.subr.bf16.mxu0 0
  %1212 = vmatpush1.bf16.msra.mxu0 0
  %1213 = vmatprep.mubr.bf16.mxu0 0
  %1214 = vmatmul.mubr.bf16.gmra.mrb[0].mxu0 %v1139
  %v1215 = vpop.f32.mrb[0].mxu0
  %v1216 = vadd.f32 %v456, %v1215
  %v1217 = vpop.f32.mrb[0].mxu0
  %v1218 = vpop.f32.mrb[0].mxu0
  %v1219 = vpop.f32.mrb[0].mxu0
  %1220 = vdwg.mxu0
  %v1221 = vadd.f32 %v1136, %v1175
  %v1222 = vmul.f32 %v1221, 0.5
  %v1223 = vtanh.pop %v1222
  %v1224 = vadd.f32 %v1223, 1.0
  %v1225 = vmul.f32 %v1224, 0.5
  %v1226 = vadd.f32 %v1137, %v1177
  %v1227 = vmul.f32 %v1226, 0.5
  %v1228 = vtanh.pop %v1227
  %v1229 = vadd.f32 %v1228, 1.0
  %v1230 = vmul.f32 %v1229, 0.5
  %v1231 = vmul.f32 %v1225, %v1216
  %v1232 = vadd.f32 %v1138, %v1231
  %v1233 = vtanh.pop %v1232
  %v1234 = vsub.f32 1.0, %v1230
  %v1235 = vmul.f32 %v1234, %v1233
  %v1236 = vmul.f32 %v1230, %v1134
  %v1237 = vadd.f32 %v1235, %v1236
  %1238 = vst [vmem:[#allocation3 + $0x28] sm:$0xff] %v1237
  %v1239 = vld [vmem:[#allocation2 + $0x90] sm:$0xff]
  %v1240 = vld [vmem:[#allocation2 + $0x98] sm:$0xff]
  %v1241 = vld [vmem:[#allocation2 + $0xa0] sm:$0xff]
  %v1242 = vpack.c.bf16 %v1237, %v1237
  %1243 = vmatprep.subr.bf16.mxu0 %v578
  %1244 = vmatpush1.bf16.msra.mxu0 %v577
  %1245 = vmatprep.subr.bf16.mxu0 %v581
  %1246 = vmatpush1.bf16.msra.mxu0 %v580
  %1247 = vmatprep.subr.bf16.mxu0 %v584
  %1248 = vmatpush1.bf16.msra.mxu0 %v583
  %1249 = vmatprep.subr.bf16.mxu0 %v587
  %1250 = vmatpush1.bf16.msra.mxu0 %v586
  %1251 = vmatprep.subr.bf16.mxu0 %v590
  %1252 = vmatpush1.bf16.msra.mxu0 %v589
  %1253 = vmatprep.subr.bf16.mxu0 %v593
  %1254 = vmatpush1.bf16.msra.mxu0 %v592
  %1255 = vmatprep.subr.bf16.mxu0 %v596
  %1256 = vmatpush1.bf16.msra.mxu0 %v595
  %1257 = vmatprep.subr.bf16.mxu0 %v599
  %1258 = vmatpush1.bf16.msra.mxu0 %v598
  %1259 = vmatprep.subr.bf16.mxu0 0
  %1260 = vmatpush1.bf16.msra.mxu0 0
  %1261 = vmatprep.subr.bf16.mxu0 0
  %1262 = vmatpush1.bf16.msra.mxu0 0
  %1263 = vmatprep.subr.bf16.mxu0 0
  %1264 = vmatpush1.bf16.msra.mxu0 0
  %1265 = vmatprep.subr.bf16.mxu0 0
  %1266 = vmatpush1.bf16.msra.mxu0 0
  %1267 = vmatprep.subr.bf16.mxu0 0
  %1268 = vmatpush1.bf16.msra.mxu0 0
  %1269 = vmatprep.subr.bf16.mxu0 0
  %1270 = vmatpush1.bf16.msra.mxu0 0
  %1271 = vmatprep.subr.bf16.mxu0 0
  %1272 = vmatpush1.bf16.msra.mxu0 0
  %1273 = vmatprep.subr.bf16.mxu0 0
  %1274 = vmatpush1.bf16.msra.mxu0 0
  %1275 = vmatprep.mubr.bf16.mxu0 0
  %1276 = vmatmul.mubr.bf16.gmra.mrb[0].mxu0 %v1242
  %v1277 = vpop.f32.mrb[0].mxu0
  %v1278 = vadd.f32 %v448, %v1277
  %v1279 = vpop.f32.mrb[0].mxu0
  %v1280 = vadd.f32 %v452, %v1279
  %v1281 = vpop.f32.mrb[0].mxu0
  %v1282 = vpop.f32.mrb[0].mxu0
  %1283 = vdwg.mxu0
  %1284 = vmatprep.subr.bf16.mxu0 0
  %1285 = vmatpush1.bf16.msra.mxu0 %v579
  %1286 = vmatprep.subr.bf16.mxu0 0
  %1287 = vmatpush1.bf16.msra.mxu0 %v582
  %1288 = vmatprep.subr.bf16.mxu0 0
  %1289 = vmatpush1.bf16.msra.mxu0 %v585
  %1290 = vmatprep.subr.bf16.mxu0 0
  %1291 = vmatpush1.bf16.msra.mxu0 %v588
  %1292 = vmatprep.subr.bf16.mxu0 0
  %1293 = vmatpush1.bf16.msra.mxu0 %v591
  %1294 = vmatprep.subr.bf16.mxu0 0
  %1295 = vmatpush1.bf16.msra.mxu0 %v594
  %1296 = vmatprep.subr.bf16.mxu0 0
  %1297 = vmatpush1.bf16.msra.mxu0 %v597
  %1298 = vmatprep.subr.bf16.mxu0 0
  %1299 = vmatpush1.bf16.msra.mxu0 %v600
  %1300 = vmatprep.subr.bf16.mxu0 0
  %1301 = vmatpush1.bf16.msra.mxu0 0
  %1302 = vmatprep.subr.bf16.mxu0 0
  %1303 = vmatpush1.bf16.msra.mxu0 0
  %1304 = vmatprep.subr.bf16.mxu0 0
  %1305 = vmatpush1.bf16.msra.mxu0 0
  %1306 = vmatprep.subr.bf16.mxu0 0
  %1307 = vmatpush1.bf16.msra.mxu0 0
  %1308 = vmatprep.subr.bf16.mxu0 0
  %1309 = vmatpush1.bf16.msra.mxu0 0
  %1310 = vmatprep.subr.bf16.mxu0 0
  %1311 = vmatpush1.bf16.msra.mxu0 0
  %1312 = vmatprep.subr.bf16.mxu0 0
  %1313 = vmatpush1.bf16.msra.mxu0 0
  %1314 = vmatprep.subr.bf16.mxu0 0
  %1315 = vmatpush1.bf16.msra.mxu0 0
  %1316 = vmatprep.mubr.bf16.mxu0 0
  %1317 = vmatmul.mubr.bf16.gmra.mrb[0].mxu0 %v1242
  %v1318 = vpop.f32.mrb[0].mxu0
  %v1319 = vadd.f32 %v456, %v1318
  %v1320 = vpop.f32.mrb[0].mxu0
  %v1321 = vpop.f32.mrb[0].mxu0
  %v1322 = vpop.f32.mrb[0].mxu0
  %1323 = vdwg.mxu0
  %v1324 = vadd.f32 %v1239, %v1278
  %v1325 = vmul.f32 %v1324, 0.5
  %v1326 = vtanh.pop %v1325
  %v1327 = vadd.f32 %v1326, 1.0
  %v1328 = vmul.f32 %v1327, 0.5
  %v1329 = vadd.f32 %v1240, %v1280
  %v1330 = vmul.f32 %v1329, 0.5
  %v1331 = vtanh.pop %v1330
  %v1332 = vadd.f32 %v1331, 1.0
  %v1333 = vmul.f32 %v1332, 0.5
  %v1334 = vmul.f32 %v1328, %v1319
  %v1335 = vadd.f32 %v1241, %v1334
  %v1336 = vtanh.pop %v1335
  %v1337 = vsub.f32 1.0, %v1333
  %v1338 = vmul.f32 %v1337, %v1336
  %v1339 = vmul.f32 %v1333, %v1237
  %v1340 = vadd.f32 %v1338, %v1339
  %1341 = vst [vmem:[#allocation3 + $0x30] sm:$0xff] %v1340
  %v1342 = vld [vmem:[#allocation2 + $0xa8] sm:$0xff]
  %v1343 = vld [vmem:[#allocation2 + $0xb0] sm:$0xff]
  %v1344 = vld [vmem:[#allocation2 + $0xb8] sm:$0xff]
  %v1345 = vpack.c.bf16 %v1340, %v1340
  %1346 = vmatprep.subr.bf16.mxu0 %v578
  %1347 = vmatpush1.bf16.msra.mxu0 %v577
  %1348 = vmatprep.subr.bf16.mxu0 %v581
  %1349 = vmatpush1.bf16.msra.mxu0 %v580
  %1350 = vmatprep.subr.bf16.mxu0 %v584
  %1351 = vmatpush1.bf16.msra.mxu0 %v583
  %1352 = vmatprep.subr.bf16.mxu0 %v587
  %1353 = vmatpush1.bf16.msra.mxu0 %v586
  %1354 = vmatprep.subr.bf16.mxu0 %v590
  %1355 = vmatpush1.bf16.msra.mxu0 %v589
  %1356 = vmatprep.subr.bf16.mxu0 %v593
  %1357 = vmatpush1.bf16.msra.mxu0 %v592
  %1358 = vmatprep.subr.bf16.mxu0 %v596
  %1359 = vmatpush1.bf16.msra.mxu0 %v595
  %1360 = vmatprep.subr.bf16.mxu0 %v599
  %1361 = vmatpush1.bf16.msra.mxu0 %v598
  %1362 = vmatprep.subr.bf16.mxu0 0
  %1363 = vmatpush1.bf16.msra.mxu0 0
  %1364 = vmatprep.subr.bf16.mxu0 0
  %1365 = vmatpush1.bf16.msra.mxu0 0
  %1366 = vmatprep.subr.bf16.mxu0 0
  %1367 = vmatpush1.bf16.msra.mxu0 0
  %1368 = vmatprep.subr.bf16.mxu0 0
  %1369 = vmatpush1.bf16.msra.mxu0 0
  %1370 = vmatprep.subr.bf16.mxu0 0
  %1371 = vmatpush1.bf16.msra.mxu0 0
  %1372 = vmatprep.subr.bf16.mxu0 0
  %1373 = vmatpush1.bf16.msra.mxu0 0
  %1374 = vmatprep.subr.bf16.mxu0 0
  %1375 = vmatpush1.bf16.msra.mxu0 0
  %1376 = vmatprep.subr.bf16.mxu0 0
  %1377 = vmatpush1.bf16.msra.mxu0 0
  %1378 = vmatprep.mubr.bf16.mxu0 0
  %1379 = vmatmul.mubr.bf16.gmra.mrb[0].mxu0 %v1345
  %v1380 = vpop.f32.mrb[0].mxu0
  %v1381 = vadd.f32 %v448, %v1380
  %v1382 = vpop.f32.mrb[0].mxu0
  %v1383 = vadd.f32 %v452, %v1382
  %v1384 = vpop.f32.mrb[0].mxu0
  %v1385 = vpop.f32.mrb[0].mxu0
  %1386 = vdwg.mxu0
  %1387 = vmatprep.subr.bf16.mxu0 0
  %1388 = vmatpush1.bf16.msra.mxu0 %v579
  %1389 = vmatprep.subr.bf16.mxu0 0
  %1390 = vmatpush1.bf16.msra.mxu0 %v582
  %1391 = vmatprep.subr.bf16.mxu0 0
  %1392 = vmatpush1.bf16.msra.mxu0 %v585
  %1393 = vmatprep.subr.bf16.mxu0 0
  %1394 = vmatpush1.bf16.msra.mxu0 %v588
  %1395 = vmatprep.subr.bf16.mxu0 0
  %1396 = vmatpush1.bf16.msra.mxu0 %v591
  %1397 = vmatprep.subr.bf16.mxu0 0
  %1398 = vmatpush1.bf16.msra.mxu0 %v594
  %1399 = vmatprep.subr.bf16.mxu0 0
  %1400 = vmatpush1.bf16.msra.mxu0 %v597
  %1401 = vmatprep.subr.bf16.mxu0 0
  %1402 = vmatpush1.bf16.msra.mxu0 %v600
  %1403 = vmatprep.subr.bf16.mxu0 0
  %1404 = vmatpush1.bf16.msra.mxu0 0
  %1405 = vmatprep.subr.bf16.mxu0 0
  %1406 = vmatpush1.bf16.msra.mxu0 0
  %1407 = vmatprep.subr.bf16.mxu0 0
  %1408 = vmatpush1.bf16.msra.mxu0 0
  %1409 = vmatprep.subr.bf16.mxu0 0
  %1410 = vmatpush1.bf16.msra.mxu0 0
  %1411 = vmatprep.subr.bf16.mxu0 0
  %1412 = vmatpush1.bf16.msra.mxu0 0
  %1413 = vmatprep.subr.bf16.mxu0 0
  %1414 = vmatpush1.bf16.msra.mxu0 0
  %1415 = vmatprep.subr.bf16.mxu0 0
  %1416 = vmatpush1.bf16.msra.mxu0 0
  %1417 = vmatprep.subr.bf16.mxu0 0
  %1418 = vmatpush1.bf16.msra.mxu0 0
  %1419 = vmatprep.mubr.bf16.mxu0 0
  %1420 = vmatmul.mubr.bf16.gmra.mrb[0].mxu0 %v1345
  %v1421 = vpop.f32.mrb[0].mxu0
  %v1422 = vadd.f32 %v456, %v1421
  %v1423 = vpop.f32.mrb[0].mxu0
  %v1424 = vpop.f32.mrb[0].mxu0
  %v1425 = vpop.f32.mrb[0].mxu0
  %1426 = vdwg.mxu0
  %v1427 = vadd.f32 %v1342, %v1381
  %v1428 = vmul.f32 %v1427, 0.5
  %v1429 = vtanh.pop %v1428
  %v1430 = vadd.f32 %v1429, 1.0
  %v1431 = vmul.f32 %v1430, 0.5
  %v1432 = vadd.f32 %v1343, %v1383
  %v1433 = vmul.f32 %v1432, 0.5
  %v1434 = vtanh.pop %v1433
  %v1435 = vadd.f32 %v1434, 1.0
  %v1436 = vmul.f32 %v1435, 0.5
  %v1437 = vmul.f32 %v1431, %v1422
  %v1438 = vadd.f32 %v1344, %v1437
  %v1439 = vtanh.pop %v1438
  %v1440 = vsub.f32 1.0, %v1436
  %v1441 = vmul.f32 %v1440, %v1439
  %v1442 = vmul.f32 %v1436, %v1340
  %v1443 = vadd.f32 %v1441, %v1442
  %1444 = vst [vmem:[#allocation3 + $0x38] sm:$0xff] %v1443
  %1445 = vst [vmem:[#allocation4] sm:$0xff] %v1443
  %v1446 = vld [vmem:[#allocation3] sm:$0xff]
  %v1447 = vld [vmem:[#allocation3 + $0x8] sm:$0xff]
  %v1448 = vld [vmem:[#allocation3 + $0x10] sm:$0xff]
  %v1449 = vld [vmem:[#allocation3 + $0x18] sm:$0xff]
  %v1450 = vld [vmem:[#allocation3 + $0x20] sm:$0xff]
  %v1451 = vld [vmem:[#allocation3 + $0x28] sm:$0xff]
  %v1452 = vld [vmem:[#allocation3 + $0x30] sm:$0xff]
  %v1453 = vld [vmem:[#allocation3 + $0x38] sm:$0xff]
  %v1454 = vpack.c.bf16 %v1447, %v1446
  %v1455 = vpack.c.bf16 %v1449, %v1448
  %v1456 = vpack.c.bf16 %v1451, %v1450
  %v1457 = vpack.c.bf16 %v1453, %v1452
  %v1458 = vld [vmem:[%s7] sm:$0xf]
  %v1459 = vld [vmem:[%s7 + $0x4] sm:$0xf]
  %v1460 = vld [vmem:[%s7 + $0x8] sm:$0xf]
  %v1461 = vld [vmem:[%s7 + $0xc] sm:$0xf]
  %v1462 = vld [vmem:[%s7 + $0x10] sm:$0xf]
  %v1463 = vld [vmem:[%s7 + $0x14] sm:$0xf]
  %v1464 = vld [vmem:[%s7 + $0x18] sm:$0xf]
  %v1465 = vld [vmem:[%s7 + $0x1c] sm:$0xf]
  %v1466 = vld [vmem:[%s7 + $0x20] sm:$0xf]
  %v1467 = vld [vmem:[%s7 + $0x24] sm:$0xf]
  %v1468 = vld [vmem:[%s7 + $0x28] sm:$0xf]
  %v1469 = vld [vmem:[%s7 + $0x2c] sm:$0xf]
  %v1470 = vld [vmem:[%s7 + $0x30] sm:$0xf]
  %v1471 = vld [vmem:[%s7 + $0x34] sm:$0xf]
  %v1472 = vld [vmem:[%s7 + $0x38] sm:$0xf]
  %v1473 = vld [vmem:[%s7 + $0x3c] sm:$0xf]
  %v1474 = vld [vmem:[%s8] sm:$0x1]
  %v1476 = vlaneseq
  %v1477 = vshrl.u32 %v1476, 7
  %v1478 = vsub.s32 0, %v1477
  %v1479 = vrot.slane %v1474, %v1478
  %v1497 = vunpack.c.l.b16 %v1458
  %v1498 = vunpack.c.l.b16 %v1459
  %v1499 = vunpack.c.l.b16 %v1460
  %v1500 = vunpack.c.l.b16 %v1461
  %v1501 = vunpack.c.l.b16 %v1462
  %v1502 = vunpack.c.l.b16 %v1463
  %v1503 = vunpack.c.l.b16 %v1464
  %v1504 = vunpack.c.l.b16 %v1465
  %v1505 = vunpack.c.l.b16 %v1466
  %v1506 = vunpack.c.l.b16 %v1467
  %v1507 = vunpack.c.l.b16 %v1468
  %v1508 = vunpack.c.l.b16 %v1469
  %v1509 = vunpack.c.l.b16 %v1470
  %v1510 = vunpack.c.l.b16 %v1471
  %v1511 = vunpack.c.l.b16 %v1472
  %v1512 = vunpack.c.l.b16 %v1473
  %v1513 = vpack.c.b16 %v1498, %v1497
  %v1514 = vpack.c.b16 %v1500, %v1499
  %v1515 = vpack.c.b16 %v1502, %v1501
  %v1516 = vpack.c.b16 %v1504, %v1503
  %v1517 = vpack.c.b16 %v1506, %v1505
  %v1518 = vpack.c.b16 %v1508, %v1507
  %v1519 = vpack.c.b16 %v1510, %v1509
  %v1520 = vpack.c.b16 %v1512, %v1511
  %1529 = vmatprep.subr.bf16.mxu0 0
  %1530 = vmatpush1.bf16.msra.mxu0 %v1513
  %1531 = vmatprep.subr.bf16.mxu0 0
  %1532 = vmatpush1.bf16.msra.mxu0 %v1514
  %1533 = vmatprep.subr.bf16.mxu0 0
  %1534 = vmatpush1.bf16.msra.mxu0 %v1515
  %1535 = vmatprep.subr.bf16.mxu0 0
  %1536 = vmatpush1.bf16.msra.mxu0 %v1516
  %1537 = vmatprep.subr.bf16.mxu0 0
  %1538 = vmatpush1.bf16.msra.mxu0 %v1517
  %1539 = vmatprep.subr.bf16.mxu0 0
  %1540 = vmatpush1.bf16.msra.mxu0 %v1518
  %1541 = vmatprep.subr.bf16.mxu0 0
  %1542 = vmatpush1.bf16.msra.mxu0 %v1519
  %1543 = vmatprep.subr.bf16.mxu0 0
  %1544 = vmatpush1.bf16.msra.mxu0 %v1520
  %1545 = vmatprep.subr.bf16.mxu0 0
  %1546 = vmatpush1.bf16.msra.mxu0 0
  %1547 = vmatprep.subr.bf16.mxu0 0
  %1548 = vmatpush1.bf16.msra.mxu0 0
  %1549 = vmatprep.subr.bf16.mxu0 0
  %1550 = vmatpush1.bf16.msra.mxu0 0
  %1551 = vmatprep.subr.bf16.mxu0 0
  %1552 = vmatpush1.bf16.msra.mxu0 0
  %1553 = vmatprep.subr.bf16.mxu0 0
  %1554 = vmatpush1.bf16.msra.mxu0 0
  %1555 = vmatprep.subr.bf16.mxu0 0
  %1556 = vmatpush1.bf16.msra.mxu0 0
  %1557 = vmatprep.subr.bf16.mxu0 0
  %1558 = vmatpush1.bf16.msra.mxu0 0
  %1559 = vmatprep.subr.bf16.mxu0 0
  %1560 = vmatpush1.bf16.msra.mxu0 0
  %1561 = vmatprep.mubr.bf16.mxu0 0
  %1562 = vmatmul.mubr.bf16.gmra.mrb[0].mxu0 %v1454
  %v1563 = vpop.f32.mrb[0].mxu0
  %v1564 = vadd.f32 %v1479, %v1563
  %v1565 = vpop.f32.mrb[0].mxu0
  %v1566 = vpop.f32.mrb[0].mxu0
  %v1567 = vadd.f32 %v1479, %v1566
  %v1568 = vpop.f32.mrb[0].mxu0
  %1569 = vmatprep.mubr.bf16.mxu0 0
  %1570 = vmatmul.mubr.bf16.gmra.mrb[0].mxu0 %v1455
  %v1571 = vpop.f32.mrb[0].mxu0
  %v1572 = vadd.f32 %v1479, %v1571
  %v1573 = vpop.f32.mrb[0].mxu0
  %v1574 = vpop.f32.mrb[0].mxu0
  %v1575 = vadd.f32 %v1479, %v1574
  %v1576 = vpop.f32.mrb[0].mxu0
  %1577 = vmatprep.mubr.bf16.mxu0 0
  %1578 = vmatmul.mubr.bf16.gmra.mrb[0].mxu0 %v1456
  %v1579 = vpop.f32.mrb[0].mxu0
  %v1580 = vadd.f32 %v1479, %v1579
  %v1581 = vpop.f32.mrb[0].mxu0
  %v1582 = vpop.f32.mrb[0].mxu0
  %v1583 = vadd.f32 %v1479, %v1582
  %v1584 = vpop.f32.mrb[0].mxu0
  %1585 = vmatprep.mubr.bf16.mxu0 0
  %1586 = vmatmul.mubr.bf16.gmra.mrb[0].mxu0 %v1457
  %v1587 = vpop.f32.mrb[0].mxu0
  %v1588 = vadd.f32 %v1479, %v1587
  %v1589 = vpop.f32.mrb[0].mxu0
  %v1590 = vpop.f32.mrb[0].mxu0
  %v1591 = vadd.f32 %v1479, %v1590
  %v1592 = vpop.f32.mrb[0].mxu0
  %1593 = vdwg.mxu0
  %v1594 = vmax.f32 %v1564, 0.0
  %v1595 = vmax.f32 %v1567, 0.0
  %v1596 = vmax.f32 %v1572, 0.0
  %v1597 = vmax.f32 %v1575, 0.0
  %v1598 = vmax.f32 %v1580, 0.0
  %v1599 = vmax.f32 %v1583, 0.0
  %v1600 = vmax.f32 %v1588, 0.0
  %v1601 = vmax.f32 %v1591, 0.0
  %v1602 = vpack.c.bf16 %v1595, %v1594
  %v1603 = vpack.c.bf16 %v1597, %v1596
  %v1604 = vpack.c.bf16 %v1599, %v1598
  %v1605 = vpack.c.bf16 %v1601, %v1600
  %v1606 = vld [vmem:[%s9] sm:$0xf]
  %v1607 = vld [vmem:[%s9 + $0x4] sm:$0xf]
  %v1608 = vld [vmem:[%s9 + $0x8] sm:$0xf]
  %v1609 = vld [vmem:[%s9 + $0xc] sm:$0xf]
  %v1610 = vld [vmem:[%s9 + $0x10] sm:$0xf]
  %v1611 = vld [vmem:[%s9 + $0x14] sm:$0xf]
  %v1612 = vld [vmem:[%s9 + $0x18] sm:$0xf]
  %v1613 = vld [vmem:[%s9 + $0x1c] sm:$0xf]
  %v1614 = vld [vmem:[%s9 + $0x20] sm:$0xf]
  %v1615 = vld [vmem:[%s9 + $0x24] sm:$0xf]
  %v1616 = vld [vmem:[%s9 + $0x28] sm:$0xf]
  %v1617 = vld [vmem:[%s9 + $0x2c] sm:$0xf]
  %v1618 = vld [vmem:[%s9 + $0x30] sm:$0xf]
  %v1619 = vld [vmem:[%s9 + $0x34] sm:$0xf]
  %v1620 = vld [vmem:[%s9 + $0x38] sm:$0xf]
  %v1621 = vld [vmem:[%s9 + $0x3c] sm:$0xf]
  %v1622 = vld [vmem:[%s10] sm:$0x1]
  %v1624 = vlaneseq
  %v1625 = vshrl.u32 %v1624, 7
  %v1626 = vsub.s32 0, %v1625
  %v1627 = vrot.slane %v1622, %v1626
  %v1645 = vunpack.c.l.b16 %v1606
  %v1646 = vunpack.c.l.b16 %v1607
  %v1647 = vunpack.c.l.b16 %v1608
  %v1648 = vunpack.c.l.b16 %v1609
  %v1649 = vunpack.c.l.b16 %v1610
  %v1650 = vunpack.c.l.b16 %v1611
  %v1651 = vunpack.c.l.b16 %v1612
  %v1652 = vunpack.c.l.b16 %v1613
  %v1653 = vunpack.c.l.b16 %v1614
  %v1654 = vunpack.c.l.b16 %v1615
  %v1655 = vunpack.c.l.b16 %v1616
  %v1656 = vunpack.c.l.b16 %v1617
  %v1657 = vunpack.c.l.b16 %v1618
  %v1658 = vunpack.c.l.b16 %v1619
  %v1659 = vunpack.c.l.b16 %v1620
  %v1660 = vunpack.c.l.b16 %v1621
  %v1661 = vpack.c.b16 %v1646, %v1645
  %v1662 = vpack.c.b16 %v1648, %v1647
  %v1663 = vpack.c.b16 %v1650, %v1649
  %v1664 = vpack.c.b16 %v1652, %v1651
  %v1665 = vpack.c.b16 %v1654, %v1653
  %v1666 = vpack.c.b16 %v1656, %v1655
  %v1667 = vpack.c.b16 %v1658, %v1657
  %v1668 = vpack.c.b16 %v1660, %v1659
  %1677 = vmatprep.subr.bf16.mxu0 0
  %1678 = vmatpush1.bf16.msra.mxu0 %v1661
  %1679 = vmatprep.subr.bf16.mxu0 0
  %1680 = vmatpush1.bf16.msra.mxu0 %v1662
  %1681 = vmatprep.subr.bf16.mxu0 0
  %1682 = vmatpush1.bf16.msra.mxu0 %v1663
  %1683 = vmatprep.subr.bf16.mxu0 0
  %1684 = vmatpush1.bf16.msra.mxu0 %v1664
  %1685 = vmatprep.subr.bf16.mxu0 0
  %1686 = vmatpush1.bf16.msra.mxu0 %v1665
  %1687 = vmatprep.subr.bf16.mxu0 0
  %1688 = vmatpush1.bf16.msra.mxu0 %v1666
  %1689 = vmatprep.subr.bf16.mxu0 0
  %1690 = vmatpush1.bf16.msra.mxu0 %v1667
  %1691 = vmatprep.subr.bf16.mxu0 0
  %1692 = vmatpush1.bf16.msra.mxu0 %v1668
  %1693 = vmatprep.subr.bf16.mxu0 0
  %1694 = vmatpush1.bf16.msra.mxu0 0
  %1695 = vmatprep.subr.bf16.mxu0 0
  %1696 = vmatpush1.bf16.msra.mxu0 0
  %1697 = vmatprep.subr.bf16.mxu0 0
  %1698 = vmatpush1.bf16.msra.mxu0 0
  %1699 = vmatprep.subr.bf16.mxu0 0
  %1700 = vmatpush1.bf16.msra.mxu0 0
  %1701 = vmatprep.subr.bf16.mxu0 0
  %1702 = vmatpush1.bf16.msra.mxu0 0
  %1703 = vmatprep.subr.bf16.mxu0 0
  %1704 = vmatpush1.bf16.msra.mxu0 0
  %1705 = vmatprep.subr.bf16.mxu0 0
  %1706 = vmatpush1.bf16.msra.mxu0 0
  %1707 = vmatprep.subr.bf16.mxu0 0
  %1708 = vmatpush1.bf16.msra.mxu0 0
  %1709 = vmatprep.mubr.bf16.mxu0 0
  %1710 = vmatmul.mubr.bf16.gmra.mrb[0].mxu0 %v1602
  %v1711 = vpop.f32.mrb[0].mxu0
  %v1712 = vadd.f32 %v1627, %v1711
  %v1713 = vpop.f32.mrb[0].mxu0
  %v1714 = vpop.f32.mrb[0].mxu0
  %v1715 = vadd.f32 %v1627, %v1714
  %v1716 = vpop.f32.mrb[0].mxu0
  %1717 = vmatprep.mubr.bf16.mxu0 0
  %1718 = vmatmul.mubr.bf16.gmra.mrb[0].mxu0 %v1603
  %v1719 = vpop.f32.mrb[0].mxu0
  %v1720 = vadd.f32 %v1627, %v1719
  %v1721 = vpop.f32.mrb[0].mxu0
  %v1722 = vpop.f32.mrb[0].mxu0
  %v1723 = vadd.f32 %v1627, %v1722
  %v1724 = vpop.f32.mrb[0].mxu0
  %1725 = vmatprep.mubr.bf16.mxu0 0
  %1726 = vmatmul.mubr.bf16.gmra.mrb[0].mxu0 %v1604
  %v1727 = vpop.f32.mrb[0].mxu0
  %v1728 = vadd.f32 %v1627, %v1727
  %v1729 = vpop.f32.mrb[0].mxu0
  %v1730 = vpop.f32.mrb[0].mxu0
  %v1731 = vadd.f32 %v1627, %v1730
  %v1732 = vpop.f32.mrb[0].mxu0
  %1733 = vmatprep.mubr.bf16.mxu0 0
  %1734 = vmatmul.mubr.bf16.gmra.mrb[0].mxu0 %v1605
  %v1735 = vpop.f32.mrb[0].mxu0
  %v1736 = vadd.f32 %v1627, %v1735
  %v1737 = vpop.f32.mrb[0].mxu0
  %v1738 = vpop.f32.mrb[0].mxu0
  %v1739 = vadd.f32 %v1627, %v1738
  %v1740 = vpop.f32.mrb[0].mxu0
  %1741 = vdwg.mxu0
  %1742 = vst [vmem:[%s11] sm:$0xff] %v1712
  %1743 = vst [vmem:[%s11 + $0x8] sm:$0xff] %v1715
  %1744 = vst [vmem:[%s11 + $0x10] sm:$0xff] %v1720
  %1745 = vst [vmem:[%s11 + $0x18] sm:$0xff] %v1723
  %1746 = vst [vmem:[%s11 + $0x20] sm:$0xff] %v1728
  %1747 = vst [vmem:[%s11 + $0x28] sm:$0xff] %v1731
  %1748 = vst [vmem:[%s11 + $0x30] sm:$0xff] %v1736
  %1749 = vst [vmem:[%s11 + $0x38] sm:$0xff] %v1739
  // Predicated region
  $region50: #{gru_actor_critic_forward.1} parent=0 // pred_check
    _
  $region51: #{gru_actor_critic_forward.1} parent=0 // pred_check_branch
    %1751 = sbr.rel (0) target = $region53
  $region52: #{gru_actor_critic_forward.1} parent=0 // pred_region
    _
  $region53: #{gru_actor_critic_forward.1} parent=0 // pred_fallthru
    _
  // Predicated region
  $region54: #{gru_actor_critic_forward.1} parent=0 // pred_check
    _
  $region55: #{gru_actor_critic_forward.1} parent=0 // pred_check_branch
    %1753 = sbr.rel (0) target = $region57
  $region56: #{gru_actor_critic_forward.1} parent=0 // pred_region
    _
  $region57: #{gru_actor_critic_forward.1} parent=0 // pred_fallthru
    _

</llo_original>
